<compile_context>
chip_gen: v6e
topology: v6e:2x2x1
jax: 0.10.0
libtpu: 0.0.40
codegen_flags: <defaults>
</compile_context>

<pallas_src>
import functools

import jax
import jax.numpy as jnp
from jax.experimental import pallas as pl
from jax.experimental.pallas import tpu as pltpu


def _graph_trojan_kernel(flag_ref, thrd_ref, x_ref, wf_ref, bf_ref, we_ref,
                         be_ref, feat_ref, edge_ref, *, static_sigmoid):
    """One row tile: two lane-dense MXU matmuls, sigmoid on the feat columns,
    GradWhere thresholding on the edge columns."""
    x = x_ref[...]                                             # (tile_n, n_feat) f32
    feat_lin = jnp.dot(x, wf_ref[...],
                       preferred_element_type=jnp.float32) + bf_ref[...]
    edge_lin = jnp.dot(x, we_ref[...],
                       preferred_element_type=jnp.float32) + be_ref[...]

    # GradWhere forward: strict (edge_lin > thrd) -> 1.0 / 0.0.  The 0/1 values
    # are exactly representable in bf16, so the narrow output dtype is lossless.
    edge_ref[...] = (edge_lin > thrd_ref[0]).astype(edge_ref.dtype)

    if static_sigmoid is None:
        # Global [0,1] gate (computed on the whole input in the wrapper) passed
        # as an int32 scalar; keeps the per-tile result consistent with the
        # module's GLOBAL min/max semantics.
        @pl.when(flag_ref[0] != 0)
        def _():
            feat_ref[...] = jax.nn.sigmoid(feat_lin)

        @pl.when(flag_ref[0] == 0)
        def _():
            feat_ref[...] = feat_lin
    elif static_sigmoid:
        feat_ref[...] = jax.nn.sigmoid(feat_lin)
    else:
        feat_ref[...] = feat_lin


def _row_tiling(n, max_tile=1024):
    """Pick (tile_n, n_pad): tile rows are a multiple of 16 (bf16 sublane tile),
    padding is minimal, and the number of row tiles is even so both v7x
    TensorCores get balanced work (harmless on single-TC v5e/v6e)."""
    base = 16
    nb = pl.cdiv(n, base) * base
    t = max(2, pl.cdiv(nb, max_tile))
    t += t % 2                                   # even number of row tiles
    tile = pl.cdiv(pl.cdiv(nb, t), base) * base
    return tile, tile * t


def prepare_graph_trojan_params(w_feat, b_feat, w_edge, b_edge):
    """Build the lane-padded f32 weight / bias slabs ONCE per weight set
    (hoisted off the per-call critical path).

    w_feat : (n_feat, n_out*n_feat)            (already transposed vs. torch)
    b_feat : (n_out*n_feat,)
    w_edge : (n_feat, n_out*(n_out-1)//2)
    b_edge : (n_out*(n_out-1)//2,)
    """
    n_feat, feat_out = w_feat.shape
    edge_out = w_edge.shape[1]
    feat_pad = max(128, pl.cdiv(feat_out, 128) * 128)
    edge_pad = max(128, pl.cdiv(edge_out, 128) * 128)

    wf = jnp.zeros((n_feat, feat_pad), jnp.float32)
    wf = wf.at[:, :feat_out].set(w_feat.astype(jnp.float32))
    bf = jnp.zeros((1, feat_pad), jnp.float32)
    bf = bf.at[0, :feat_out].set(b_feat.astype(jnp.float32))
    we = jnp.zeros((n_feat, edge_pad), jnp.float32)
    we = we.at[:, :edge_out].set(w_edge.astype(jnp.float32))
    be = jnp.zeros((1, edge_pad), jnp.float32)
    be = be.at[0, :edge_out].set(b_edge.astype(jnp.float32))

    return dict(w_feat=wf, b_feat=bf, w_edge=we, b_edge=be,
                n_feat=n_feat, feat_out=feat_out, edge_out=edge_out,
                feat_pad=feat_pad, edge_pad=edge_pad)


def graph_trojan_net_forward(inputs, thrd, params, *, use_sigmoid=None,
                             max_tile_n=1024):
    """Pallas forward.  `params` comes from prepare_graph_trojan_params.

    use_sigmoid: None -> dynamic gate (exact module semantics, min/max of the
                 whole input); True/False -> static gate baked into the kernel.
    Returns (feat, edge_weight), both f32.
    """
    n, n_feat = inputs.shape
    assert n_feat == params["n_feat"]
    feat_out, edge_out = params["feat_out"], params["edge_out"]
    feat_pad, edge_pad = params["feat_pad"], params["edge_pad"]

    tile_n, n_pad = _row_tiling(n, max_tile_n)

    x = inputs.astype(jnp.float32)
    if n_pad != n:
        x = jnp.pad(x, ((0, n_pad - n), (0, 0)))

    if use_sigmoid is None:
        # Global gate on the UNPADDED input (padding rows would corrupt min).
        gate = jnp.logical_and(jnp.min(inputs) >= 0.0, jnp.max(inputs) <= 1.0)
        flag = gate.astype(jnp.int32).reshape(1)
    else:
        flag = jnp.zeros((1,), jnp.int32)       # unused by the static-gate kernel

    thrd_arr = jnp.asarray(thrd, jnp.float32).reshape(1)

    kernel = functools.partial(_graph_trojan_kernel, static_sigmoid=use_sigmoid)

    feat, edge = pl.pallas_call(
        kernel,
        out_shape=(jax.ShapeDtypeStruct((n_pad, feat_pad), jnp.float32),
                   jax.ShapeDtypeStruct((n_pad, edge_pad), jnp.bfloat16)),
        grid_spec=pltpu.PrefetchScalarGridSpec(
            num_scalar_prefetch=2,              # flag (i32), thrd (f32) in SMEM
            grid=(n_pad // tile_n,),
            in_specs=[
                # x tiles over rows; weight / bias slabs stay VMEM-resident.
                pl.BlockSpec((tile_n, n_feat), lambda i, flag, thrd: (i, 0)),
                pl.BlockSpec((n_feat, feat_pad), lambda i, flag, thrd: (0, 0)),
                pl.BlockSpec((1, feat_pad), lambda i, flag, thrd: (0, 0)),
                pl.BlockSpec((n_feat, edge_pad), lambda i, flag, thrd: (0, 0)),
                pl.BlockSpec((1, edge_pad), lambda i, flag, thrd: (0, 0)),
            ],
            out_specs=(
                pl.BlockSpec((tile_n, feat_pad), lambda i, flag, thrd: (i, 0)),
                pl.BlockSpec((tile_n, edge_pad), lambda i, flag, thrd: (i, 0)),
            ),
        ),
        compiler_params=pltpu.CompilerParams(
            dimension_semantics=("parallel",)),
    )(flag, thrd_arr, x, params["w_feat"], params["b_feat"],
      params["w_edge"], params["b_edge"])

    # Row crop is required: padded rows have nonzero edge bits (bias > thrd).
    feat = feat[:n, :feat_out]
    edge = edge[:n, :edge_out].astype(jnp.float32)
    return feat, edge


def _reference(inputs, thrd, w_feat, b_feat, w_edge, b_edge):
    """Pure-JAX f32 reference matching the PyTorch module."""
    feat_lin = inputs @ w_feat + b_feat
    use_sig = jnp.logical_and(jnp.max(inputs) <= 1.0, jnp.min(inputs) >= 0.0)
    feat = jnp.where(use_sig, jax.nn.sigmoid(feat_lin), feat_lin)
    edge_lin = inputs @ w_edge + b_edge
    edge = (edge_lin > thrd).astype(jnp.float32)
    return feat, edge, edge_lin


def _check(x, thrd, params, w_feat, b_feat, w_edge, b_edge, use_sigmoid=None):
    feat, edge = graph_trojan_net_forward(x, thrd, params,
                                          use_sigmoid=use_sigmoid)
    jax.block_until_ready((feat, edge))

    feat_ref, edge_ref, edge_lin_ref = _reference(x, thrd, w_feat, b_feat,
                                                  w_edge, b_edge)
    assert feat.shape == feat_ref.shape and edge.shape == edge_ref.shape
    # Full f32 compute -> tight tolerance (only MXU accumulation-order slack).
    assert jnp.allclose(feat, feat_ref, atol=2e-5, rtol=2e-5)
    # Edge bits may only differ where edge_lin is within f32 rounding of thrd.
    near_thrd = jnp.abs(edge_lin_ref - thrd) < 1e-4
    assert bool(jnp.all(jnp.logical_or(edge == edge_ref, near_thrd)))


if __name__ == "__main__":
    # Small shapes consistent with the module: N nodes, n_feat features,
    # n_out trigger nodes.
    N, n_feat, n_out = 600, 32, 4
    feat_out = n_out * n_feat                 # 128
    edge_out = (n_out * (n_out - 1)) // 2     # 6
    thrd = 0.0

    key = jax.random.PRNGKey(0)
    k_x, k_wf, k_bf, k_we, k_be = jax.random.split(key, 5)

    # Inputs in [0, 1] -> exercises the sigmoid branch.
    x = jax.random.uniform(k_x, (N, n_feat), dtype=jnp.float32)

    # Deterministic "Linear" parameters (torch stores W as (out,in); we keep
    # the transposed (in,out) layout for the kernel).
    bound_f = 1.0 / (n_feat ** 0.5)
    w_feat = jax.random.uniform(k_wf, (n_feat, feat_out), jnp.float32,
                                -bound_f, bound_f)
    b_feat = jax.random.uniform(k_bf, (feat_out,), jnp.float32,
                                -bound_f, bound_f)
    w_edge = jax.random.uniform(k_we, (n_feat, edge_out), jnp.float32,
                                -bound_f, bound_f)
    b_edge = jax.random.uniform(k_be, (edge_out,), jnp.float32,
                                -bound_f, bound_f)

    # One-time slab construction (off the per-call path).
    params = prepare_graph_trojan_params(w_feat, b_feat, w_edge, b_edge)
    jax.block_until_ready(params)

    # Branch 1: inputs in [0, 1] -> sigmoid on feat (dynamic gate).
    _check(x, thrd, params, w_feat, b_feat, w_edge, b_edge)

    # Branch 2: inputs outside [0, 1] -> no sigmoid (dynamic gate).
    x2 = x * 2.0 - 0.5
    _check(x2, thrd, params, w_feat, b_feat, w_edge, b_edge)

    # Branch 3: nonzero threshold + static gate (no pl.when, no min/max pass).
    _check(x, 0.25, params, w_feat, b_feat, w_edge, b_edge, use_sigmoid=True)

    # TODO(synk): GradWhere's custom straight-through backward is not part of
    # the forward kernel; only the forward thresholding is implemented here.
    print("KERNEL_OK")
</pallas_src>

<mosaic_0001>
module attributes {stable_mosaic.version = 11 : i64} {
  func.func @_graph_trojan_kernel(%arg0: i32, %arg1: memref<1xi32, #tpu.memory_space<smem>>, %arg2: memref<1xf32, #tpu.memory_space<smem>>, %arg3: memref<304x32xf32, #tpu.memory_space<vmem>>, %arg4: memref<32x128xf32, #tpu.memory_space<vmem>>, %arg5: memref<1x128xf32, #tpu.memory_space<vmem>>, %arg6: memref<32x128xf32, #tpu.memory_space<vmem>>, %arg7: memref<1x128xf32, #tpu.memory_space<vmem>>, %arg8: memref<304x128xf32, #tpu.memory_space<vmem>>, %arg9: memref<304x128xbf16, #tpu.memory_space<vmem>>) attributes {dimension_semantics = [#tpu.dimension_semantics<parallel>], iteration_bounds = array<i64: 2>, scalar_prefetch = 2 : i64, scratch_operands = 0 : i64, tpu.core_type = #tpu.core_type<tc>, window_params = [{transform_indices = @transform_0, window_bounds = array<i64: 304, 32>}, {pipeline_mode = #tpu.pipeline_mode<synchronous>, transform_indices = @transform_1, window_bounds = array<i64: 32, 128>}, {pipeline_mode = #tpu.pipeline_mode<synchronous>, transform_indices = @transform_2, window_bounds = array<i64: 1, 128>}, {pipeline_mode = #tpu.pipeline_mode<synchronous>, transform_indices = @transform_3, window_bounds = array<i64: 32, 128>}, {pipeline_mode = #tpu.pipeline_mode<synchronous>, transform_indices = @transform_4, window_bounds = array<i64: 1, 128>}, {transform_indices = @transform_5, window_bounds = array<i64: 304, 128>}, {transform_indices = @transform_6, window_bounds = array<i64: 304, 128>}]} {
    %c0 = arith.constant 0 : index
    %c0_0 = arith.constant 0 : index
    %0 = vector.load %arg3[%c0, %c0_0] : memref<304x32xf32, #tpu.memory_space<vmem>>, vector<304x32xf32>
    %c0_1 = arith.constant 0 : index
    %c0_2 = arith.constant 0 : index
    %1 = vector.load %arg4[%c0_1, %c0_2] : memref<32x128xf32, #tpu.memory_space<vmem>>, vector<32x128xf32>
    %cst = arith.constant dense<0.000000e+00> : vector<304x128xf32>
    %2 = tpu.matmul %0, %1, %cst {dimension_numbers = #tpu.dot_dimension_numbers<[1], [0], [0], [1], [0, 0, 1, 1], [], []>} : vector<304x32xf32>, vector<32x128xf32>, vector<304x128xf32> -> vector<304x128xf32>
    %c0_3 = arith.constant 0 : index
    %c0_4 = arith.constant 0 : index
    %3 = vector.load %arg5[%c0_3, %c0_4] : memref<1x128xf32, #tpu.memory_space<vmem>>, vector<1x128xf32>
    %4 = vector.broadcast %3 : vector<1x128xf32> to vector<304x128xf32>
    %5 = arith.addf %2, %4 : vector<304x128xf32>
    %c0_5 = arith.constant 0 : index
    %c0_6 = arith.constant 0 : index
    %6 = vector.load %arg6[%c0_5, %c0_6] : memref<32x128xf32, #tpu.memory_space<vmem>>, vector<32x128xf32>
    %cst_7 = arith.constant dense<0.000000e+00> : vector<304x128xf32>
    %7 = tpu.matmul %0, %6, %cst_7 {dimension_numbers = #tpu.dot_dimension_numbers<[1], [0], [0], [1], [0, 0, 1, 1], [], []>} : vector<304x32xf32>, vector<32x128xf32>, vector<304x128xf32> -> vector<304x128xf32>
    %c0_8 = arith.constant 0 : index
    %c0_9 = arith.constant 0 : index
    %8 = vector.load %arg7[%c0_8, %c0_9] : memref<1x128xf32, #tpu.memory_space<vmem>>, vector<1x128xf32>
    %9 = vector.broadcast %8 : vector<1x128xf32> to vector<304x128xf32>
    %10 = arith.addf %7, %9 : vector<304x128xf32>
    %c0_10 = arith.constant 0 : index
    %11 = memref.load %arg2[%c0_10] : memref<1xf32, #tpu.memory_space<smem>>
    %12 = vector.broadcast %11 : f32 to vector<304x128xf32>
    %13 = arith.cmpf ogt, %10, %12 : vector<304x128xf32>
    %14 = arith.extui %13 : vector<304x128xi1> to vector<304x128xi32>
    %15 = arith.sitofp %14 : vector<304x128xi32> to vector<304x128xf32>
    %16 = arith.truncf %15 : vector<304x128xf32> to vector<304x128xbf16>
    %c0_11 = arith.constant 0 : index
    %c0_12 = arith.constant 0 : index
    %17 = vector.load %arg9[%c0_11, %c0_12] : memref<304x128xbf16, #tpu.memory_space<vmem>>, vector<304x128xbf16>
    tpu.vector_store %arg9[%c0_11, %c0_12], %16 {strides = array<i32>} : memref<304x128xbf16, #tpu.memory_space<vmem>>, vector<304x128xbf16>,
    %c0_13 = arith.constant 0 : index
    %18 = memref.load %arg1[%c0_13] : memref<1xi32, #tpu.memory_space<smem>>
    %c0_i32 = arith.constant 0 : i32
    %19 = arith.cmpi ne, %18, %c0_i32 : i32
    %20 = arith.extui %19 : i1 to i32
    %c0_i32_14 = arith.constant 0 : i32
    %21 = arith.cmpi ne, %20, %c0_i32_14 : i32
    scf.if %21 {
      %26 = arith.negf %5 : vector<304x128xf32>
      %27 = math.exp %26 : vector<304x128xf32>
      %cst_18 = arith.constant 1.000000e+00 : f32
      %28 = vector.broadcast %cst_18 : f32 to vector<304x128xf32>
      %29 = arith.addf %28, %27 : vector<304x128xf32>
      %30 = arith.divf %28, %29 : vector<304x128xf32>
      %c0_19 = arith.constant 0 : index
      %c0_20 = arith.constant 0 : index
      %31 = vector.load %arg8[%c0_19, %c0_20] : memref<304x128xf32, #tpu.memory_space<vmem>>, vector<304x128xf32>
      tpu.vector_store %arg8[%c0_19, %c0_20], %30 {strides = array<i32>} : memref<304x128xf32, #tpu.memory_space<vmem>>, vector<304x128xf32>,
    } else {
    }
    %c0_15 = arith.constant 0 : index
    %22 = memref.load %arg1[%c0_15] : memref<1xi32, #tpu.memory_space<smem>>
    %c0_i32_16 = arith.constant 0 : i32
    %23 = arith.cmpi eq, %22, %c0_i32_16 : i32
    %24 = arith.extui %23 : i1 to i32
    %c0_i32_17 = arith.constant 0 : i32
    %25 = arith.cmpi ne, %24, %c0_i32_17 : i32
    scf.if %25 {
      %c0_18 = arith.constant 0 : index
      %c0_19 = arith.constant 0 : index
      %26 = vector.load %arg8[%c0_18, %c0_19] : memref<304x128xf32, #tpu.memory_space<vmem>>, vector<304x128xf32>
      tpu.vector_store %arg8[%c0_18, %c0_19], %5 {strides = array<i32>} : memref<304x128xf32, #tpu.memory_space<vmem>>, vector<304x128xf32>,
    } else {
    }
    return
  }
  func.func @transform_0(%arg0: i32, %arg1: memref<1xi32, #tpu.memory_space<smem>>, %arg2: memref<1xf32, #tpu.memory_space<smem>>) -> (i32, i32) {
    %c0_i32 = arith.constant 0 : i32
    %c0_i32_0 = arith.constant 0 : i32
    return %arg0, %c0_i32 : i32, i32
  }
  func.func @transform_1(%arg0: i32, %arg1: memref<1xi32, #tpu.memory_space<smem>>, %arg2: memref<1xf32, #tpu.memory_space<smem>>) -> (i32, i32) {
    %c0_i32 = arith.constant 0 : i32
    %c0_i32_0 = arith.constant 0 : i32
    %c0_i32_1 = arith.constant 0 : i32
    return %c0_i32, %c0_i32_0 : i32, i32
  }
  func.func @transform_2(%arg0: i32, %arg1: memref<1xi32, #tpu.memory_space<smem>>, %arg2: memref<1xf32, #tpu.memory_space<smem>>) -> (i32, i32) {
    %c0_i32 = arith.constant 0 : i32
    %c0_i32_0 = arith.constant 0 : i32
    %c0_i32_1 = arith.constant 0 : i32
    return %c0_i32, %c0_i32_0 : i32, i32
  }
  func.func @transform_3(%arg0: i32, %arg1: memref<1xi32, #tpu.memory_space<smem>>, %arg2: memref<1xf32, #tpu.memory_space<smem>>) -> (i32, i32) {
    %c0_i32 = arith.constant 0 : i32
    %c0_i32_0 = arith.constant 0 : i32
    %c0_i32_1 = arith.constant 0 : i32
    return %c0_i32, %c0_i32_0 : i32, i32
  }
  func.func @transform_4(%arg0: i32, %arg1: memref<1xi32, #tpu.memory_space<smem>>, %arg2: memref<1xf32, #tpu.memory_space<smem>>) -> (i32, i32) {
    %c0_i32 = arith.constant 0 : i32
    %c0_i32_0 = arith.constant 0 : i32
    %c0_i32_1 = arith.constant 0 : i32
    return %c0_i32, %c0_i32_0 : i32, i32
  }
  func.func @transform_5(%arg0: i32, %arg1: memref<1xi32, #tpu.memory_space<smem>>, %arg2: memref<1xf32, #tpu.memory_space<smem>>) -> (i32, i32) {
    %c0_i32 = arith.constant 0 : i32
    %c0_i32_0 = arith.constant 0 : i32
    return %arg0, %c0_i32 : i32, i32
  }
  func.func @transform_6(%arg0: i32, %arg1: memref<1xi32, #tpu.memory_space<smem>>, %arg2: memref<1xf32, #tpu.memory_space<smem>>) -> (i32, i32) {
    %c0_i32 = arith.constant 0 : i32
    %c0_i32_0 = arith.constant 0 : i32
    return %arg0, %c0_i32 : i32, i32
  }
}

</mosaic_0001>

<llo_original>
// kernel: tpu_custom_call.1
$region0: #{tpu_custom_call.1}
  #allocation0 [shape = 'u32[]', space=smem, size = 0x4, offset = 0x4, fixed_abs, tag = 'smem constant byte address 0x4 - core index']
  #allocation1 [shape = 'u32[144,128]{1,0:T(1,128)}', space=vmem, size = 0x12000, scoped, tag = 'internal scratch']
  #allocation2 [shape = 's32[1]{0}', space=sflag, size = 0x4, scoped, tag = 'scoped memory for tpu_custom_call.1']
  #allocation3 [shape = 's32[1]{0:T(128)S(6)}', space=smem, size = 0x200, scoped, tag = 'prefetched SMEM operand 0']
  #allocation4 [shape = 'f32[1]{0:T(128)S(6)}', space=smem, size = 0x200, scoped, tag = 'prefetched SMEM operand 1']
  %s0 = inlined_call_operand.<no memory space> [shape: s32[1], index: 0, kind: input, shape index: {}]
  %s1 = inlined_call_operand.<no memory space> [shape: f32[1], index: 1, kind: input, shape index: {}]
  %s2 = inlined_call_operand.vmem [shape: f32[608,32], index: 2, kind: input, shape index: {}]
  %s3 = inlined_call_operand.vmem [shape: f32[32,128], index: 3, kind: input, shape index: {}]
  %s4 = inlined_call_operand.vmem [shape: f32[1,128], index: 4, kind: input, shape index: {}]
  %s5 = inlined_call_operand.vmem [shape: f32[32,128], index: 5, kind: input, shape index: {}]
  %s6 = inlined_call_operand.vmem [shape: f32[1,128], index: 6, kind: input, shape index: {}]
  %s7 = inlined_call_operand.hbm [shape: f32[608,128], index: 7, kind: output, shape index: {0}]
  %s8 = inlined_call_operand.hbm [shape: bf16[608,128], index: 8, kind: output, shape index: {1}]
  %9 = xla_tuple %s7, %s8
  %s10 = sld [smem:[#allocation0]]
  $region69: #{tpu_custom_call.1} parent=0
    _
  %s12 = ssub.s32 1, %s10
  %s13 = scalar_select 0, %s12, %s10
  %14 = sst [smem:[#allocation3]] %s0
  %15 = sst [smem:[#allocation4]] %s1
  $region1: #{tpu_custom_call.1} parent=0
    #allocation5 [shape = 'u8[311296]{0}', space=vmem, size = 0x4c000, scoped, tag = 'output window, operand 0']
    #allocation6 [shape = 's32[2]{0}', space=sflag, size = 0x8, scoped, tag = 'scoped memory for tpu_custom_call.1']
    #allocation7 [shape = 'u8[155648]{0}', space=vmem, size = 0x26000, scoped, tag = 'output window, operand 1']
    #allocation8 [shape = 's32[2]{0}', space=sflag, size = 0x8, scoped, tag = 'scoped memory for tpu_custom_call.1']
    %16 = vsyncpa [#allocation6], 0
    %s17 = scalar_lea.sflag [#allocation6], 1
    %18 = vsyncpa %s17, 0
    %19 = vsyncpa [#allocation8], 0
    %s20 = scalar_lea.sflag [#allocation8], 1
    %21 = vsyncpa %s20, 0
    loop: start=0, step=1, limit=4
    $region2: #{tpu_custom_call.1} parent=1 // loop_pre_header
      _
    $region3: #{tpu_custom_call.1} parent=1 // loop_header
      %s23 = sphi 0, %s27
      %p24 = scmp.ge.s32.totalorder %s23, 4
      %s33 = sphi 0, %s35
      %s36 = sphi 0, %s33
      %s37 = sphi 0, %s36
      %s53 = sphi 0, %s37
      %s57 = sphi 0, %s57
      %s59 = sphi 0, %s57
      %s60 = sphi 0, %s59
      %s74 = sphi 0, %s60
      %s78 = sphi 0, %s78
      %s80 = sphi 0, %s78
      %s81 = sphi 0, %s80
      %s95 = sphi 0, %s81
      %s99 = sphi 0, %s99
      %s101 = sphi 0, %s99
      %s102 = sphi 0, %s101
      %s116 = sphi 0, %s102
      %s120 = sphi 0, %s120
      %s122 = sphi 0, %s120
      %s123 = sphi 0, %s122
      %s137 = sphi 0, %s123
      %s143 = sphi 0, %s145
      %s146 = sphi 0, %s143
      %s147 = sphi 0, %s146
      %s163 = sphi 0, %s147
      %s169 = sphi 0, %s171
      %s172 = sphi 0, %s169
      %s173 = sphi 0, %s172
      %s189 = sphi 0, %s173
    $region4: #{tpu_custom_call.1} parent=1 // loop_header_branch
      %26 = sbr.rel (%p24) target = $region8
    $region5: #{tpu_custom_call.1} parent=1 // loop_body
      %s28 = ssub.s32 %s23, 1
      %s29 = ssub.s32 %s23, 2
      %s30 = sadd.s32 %s23, 1
      %s31 = ssub.s32 %s23, %s30
      %p32 = scmp.eq.s32.totalorder %s31, 0
      %s34 = sadd.s32 %s33, 1
      %s35 = scalar_select %p32, %s33, %s34
      %p38 = pneg %p32
      %p39 = scmp.eq.s32.totalorder %s23, 1
      %p40 = por %p38, %p39
      %p41 = scmp.ne.s32.totalorder %s33, %s36
      %p42 = scmp.eq.s32.totalorder %s23, 0
      %p43 = por %p41, %p42
      %p44 = scmp.ne.s32.totalorder %s33, %s36
      %p45 = scmp.eq.s32.totalorder %s28, 1
      %p46 = por %p44, %p45
      %p47 = scmp.ne.s32.totalorder %s36, %s37
      %p48 = scmp.eq.s32.totalorder %s28, 0
      %p49 = por %p47, %p48
      %p50 = scmp.ne.s32.totalorder %s36, %s37
      %p51 = scmp.eq.s32.totalorder %s29, 1
      %p52 = por %p50, %p51
      %p54 = scmp.ne.s32.totalorder %s37, %s53
      %p55 = scmp.eq.s32.totalorder %s29, 0
      %p56 = por %p54, %p55
      %s58 = sadd.s32 %s57, 1
      %p61 = scmp.eq.s32.totalorder %s23, 1
      %p62 = scmp.ne.s32.totalorder %s57, %s59
      %p63 = scmp.eq.s32.totalorder %s23, 0
      %p64 = por %p62, %p63
      %p65 = scmp.ne.s32.totalorder %s57, %s59
      %p66 = scmp.eq.s32.totalorder %s28, 1
      %p67 = por %p65, %p66
      %p68 = scmp.ne.s32.totalorder %s59, %s60
      %p69 = scmp.eq.s32.totalorder %s28, 0
      %p70 = por %p68, %p69
      %p71 = scmp.ne.s32.totalorder %s59, %s60
      %p72 = scmp.eq.s32.totalorder %s29, 1
      %p73 = por %p71, %p72
      %p75 = scmp.ne.s32.totalorder %s60, %s74
      %p76 = scmp.eq.s32.totalorder %s29, 0
      %p77 = por %p75, %p76
      %s79 = sadd.s32 %s78, 1
      %p82 = scmp.eq.s32.totalorder %s23, 1
      %p83 = scmp.ne.s32.totalorder %s78, %s80
      %p84 = scmp.eq.s32.totalorder %s23, 0
      %p85 = por %p83, %p84
      %p86 = scmp.ne.s32.totalorder %s78, %s80
      %p87 = scmp.eq.s32.totalorder %s28, 1
      %p88 = por %p86, %p87
      %p89 = scmp.ne.s32.totalorder %s80, %s81
      %p90 = scmp.eq.s32.totalorder %s28, 0
      %p91 = por %p89, %p90
      %p92 = scmp.ne.s32.totalorder %s80, %s81
      %p93 = scmp.eq.s32.totalorder %s29, 1
      %p94 = por %p92, %p93
      %p96 = scmp.ne.s32.totalorder %s81, %s95
      %p97 = scmp.eq.s32.totalorder %s29, 0
      %p98 = por %p96, %p97
      %s100 = sadd.s32 %s99, 1
      %p103 = scmp.eq.s32.totalorder %s23, 1
      %p104 = scmp.ne.s32.totalorder %s99, %s101
      %p105 = scmp.eq.s32.totalorder %s23, 0
      %p106 = por %p104, %p105
      %p107 = scmp.ne.s32.totalorder %s99, %s101
      %p108 = scmp.eq.s32.totalorder %s28, 1
      %p109 = por %p107, %p108
      %p110 = scmp.ne.s32.totalorder %s101, %s102
      %p111 = scmp.eq.s32.totalorder %s28, 0
      %p112 = por %p110, %p111
      %p113 = scmp.ne.s32.totalorder %s101, %s102
      %p114 = scmp.eq.s32.totalorder %s29, 1
      %p115 = por %p113, %p114
      %p117 = scmp.ne.s32.totalorder %s102, %s116
      %p118 = scmp.eq.s32.totalorder %s29, 0
      %p119 = por %p117, %p118
      %s121 = sadd.s32 %s120, 1
      %p124 = scmp.eq.s32.totalorder %s23, 1
      %p125 = scmp.ne.s32.totalorder %s120, %s122
      %p126 = scmp.eq.s32.totalorder %s23, 0
      %p127 = por %p125, %p126
      %p128 = scmp.ne.s32.totalorder %s120, %s122
      %p129 = scmp.eq.s32.totalorder %s28, 1
      %p130 = por %p128, %p129
      %p131 = scmp.ne.s32.totalorder %s122, %s123
      %p132 = scmp.eq.s32.totalorder %s28, 0
      %p133 = por %p131, %p132
      %p134 = scmp.ne.s32.totalorder %s122, %s123
      %p135 = scmp.eq.s32.totalorder %s29, 1
      %p136 = por %p134, %p135
      %p138 = scmp.ne.s32.totalorder %s123, %s137
      %p139 = scmp.eq.s32.totalorder %s29, 0
      %p140 = por %p138, %p139
      %s141 = ssub.s32 %s23, %s30
      %p142 = scmp.eq.s32.totalorder %s141, 0
      %s144 = sadd.s32 %s143, 1
      %s145 = scalar_select %p142, %s143, %s144
      %p148 = pneg %p142
      %p149 = scmp.eq.s32.totalorder %s23, 1
      %p150 = por %p148, %p149
      %p151 = scmp.ne.s32.totalorder %s143, %s146
      %p152 = scmp.eq.s32.totalorder %s23, 0
      %p153 = por %p151, %p152
      %p154 = scmp.ne.s32.totalorder %s143, %s146
      %p155 = scmp.eq.s32.totalorder %s28, 1
      %p156 = por %p154, %p155
      %p157 = scmp.ne.s32.totalorder %s146, %s147
      %p158 = scmp.eq.s32.totalorder %s28, 0
      %p159 = por %p157, %p158
      %p160 = scmp.ne.s32.totalorder %s146, %s147
      %p161 = scmp.eq.s32.totalorder %s29, 1
      %p162 = por %p160, %p161
      %p164 = scmp.ne.s32.totalorder %s147, %s163
      %p165 = scmp.eq.s32.totalorder %s29, 0
      %p166 = por %p164, %p165
      %s167 = ssub.s32 %s23, %s30
      %p168 = scmp.eq.s32.totalorder %s167, 0
      %s170 = sadd.s32 %s169, 1
      %s171 = scalar_select %p168, %s169, %s170
      %p174 = pneg %p168
      %p175 = scmp.eq.s32.totalorder %s23, 1
      %p176 = por %p174, %p175
      %p177 = scmp.ne.s32.totalorder %s169, %s172
      %p178 = scmp.eq.s32.totalorder %s23, 0
      %p179 = por %p177, %p178
      %p180 = scmp.ne.s32.totalorder %s169, %s172
      %p181 = scmp.eq.s32.totalorder %s28, 1
      %p182 = por %p180, %p181
      %p183 = scmp.ne.s32.totalorder %s172, %s173
      %p184 = scmp.eq.s32.totalorder %s28, 0
      %p185 = por %p183, %p184
      %p186 = scmp.ne.s32.totalorder %s172, %s173
      %p187 = scmp.eq.s32.totalorder %s29, 1
      %p188 = por %p186, %p187
      %p190 = scmp.ne.s32.totalorder %s173, %s189
      %p191 = scmp.eq.s32.totalorder %s29, 0
      %p192 = por %p190, %p191
      %p193 = scmp.le.s32.totalorder 1, %s23
      %p194 = scmp.lt.s32.totalorder %s23, 3
      %p195 = pnand %p193, %p194
      %p196 = pneg %p195
      // Predicated region
      $region9: #{tpu_custom_call.1} parent=5 // pred_check
        _
      $region10: #{tpu_custom_call.1} parent=5 // pred_check_branch
        %198 = sbr.rel (%p195) target = $region12
      $region11: #{tpu_custom_call.1} parent=5 // pred_region
        %s199 = ssub.s32 %s23, 1
        // Predicated region
        $region13: #{tpu_custom_call.1} parent=11 // pred_check
          %p200 = pneg %p70
        $region14: #{tpu_custom_call.1} parent=11 // pred_check_branch
          %202 = sbr.rel (%p200) target = $region16
        $region15: #{tpu_custom_call.1} parent=11 // pred_region
          _
        $region16: #{tpu_custom_call.1} parent=11 // pred_fallthru
          _
        // Predicated region
        $region17: #{tpu_custom_call.1} parent=11 // pred_check
          %p203 = pneg %p91
        $region18: #{tpu_custom_call.1} parent=11 // pred_check_branch
          %205 = sbr.rel (%p203) target = $region20
        $region19: #{tpu_custom_call.1} parent=11 // pred_region
          _
        $region20: #{tpu_custom_call.1} parent=11 // pred_fallthru
          _
        // Predicated region
        $region21: #{tpu_custom_call.1} parent=11 // pred_check
          %p206 = pneg %p112
        $region22: #{tpu_custom_call.1} parent=11 // pred_check_branch
          %208 = sbr.rel (%p206) target = $region24
        $region23: #{tpu_custom_call.1} parent=11 // pred_region
          _
        $region24: #{tpu_custom_call.1} parent=11 // pred_fallthru
          _
        // Predicated region
        $region25: #{tpu_custom_call.1} parent=11 // pred_check
          %p209 = pneg %p133
        $region26: #{tpu_custom_call.1} parent=11 // pred_check_branch
          %211 = sbr.rel (%p209) target = $region28
        $region27: #{tpu_custom_call.1} parent=11 // pred_region
          _
        $region28: #{tpu_custom_call.1} parent=11 // pred_fallthru
          _
      $region12: #{tpu_custom_call.1} parent=5 // pred_fallthru
        _
      %p212 = scmp.lt.s32.totalorder %s23, 2
      // Predicated region
      $region29: #{tpu_custom_call.1} parent=5 // pred_check
        %p213 = pneg %p212
      $region30: #{tpu_custom_call.1} parent=5 // pred_check_branch
        %215 = sbr.rel (%p213) target = $region32
      $region31: #{tpu_custom_call.1} parent=5 // pred_region
        // Predicated region
        $region33: #{tpu_custom_call.1} parent=31 // pred_check
          %p216 = pneg %p43
        $region34: #{tpu_custom_call.1} parent=31 // pred_check_branch
          %218 = sbr.rel (%p216) target = $region36
        $region35: #{tpu_custom_call.1} parent=31 // pred_region
          %s219 = smul.u32 38, %s23
          %p220 = scmp.lt.s32.totalorder %s219, 75
          %s221 = scalar_select %p220, %s219, 75
          %s222 = smul.addr %s221, 8
          %s223 = scalar_lea.vmem %s2, %s222
          %s224 = smul.u32 38, %s23
        $region36: #{tpu_custom_call.1} parent=31 // pred_fallthru
          _
      $region32: #{tpu_custom_call.1} parent=5 // pred_fallthru
        _
      %p225 = scmp.le.s32.totalorder 1, %s23
      %p226 = scmp.lt.s32.totalorder %s23, 3
      %p227 = pnand %p225, %p226
      %p228 = pneg %p227
      // Predicated region
      $region37: #{tpu_custom_call.1} parent=5 // pred_check
        _
      $region38: #{tpu_custom_call.1} parent=5 // pred_check_branch
        %230 = sbr.rel (%p227) target = $region40
      $region39: #{tpu_custom_call.1} parent=5 // pred_region
        %s231 = ssub.s32 %s23, 1
        %s232 = smul.u32 38, %s28
        %p233 = scmp.lt.s32.totalorder %s232, 75
        %s234 = scalar_select %p233, %s232, 75
        %s235 = smul.addr %s234, 8
        %s236 = scalar_lea.vmem %s2, %s235
        %p237 = pneg %p49
        %p238 = pneg %p46
        %p239 = pneg %p70
        %p240 = pneg %p67
        %p241 = pneg %p91
        %p242 = pneg %p88
        %p243 = pneg %p112
        %p244 = pneg %p109
        %p245 = pneg %p133
        %p246 = pneg %p130
        %p247 = pneg %p159
        %p248 = pneg %p156
        %s249 = sand.u32 %s146, 1
        %s250 = scalar_lea.sflag [#allocation6], %s249
        %s251 = sand.u32 %s146, 1
        %s252 = smul.addr %s251, 304
        %s253 = scalar_lea.vmem [#allocation5], %s252
        %p254 = pneg %p185
        %p255 = pneg %p182
        %s256 = sand.u32 %s172, 1
        %s257 = scalar_lea.sflag [#allocation8], %s256
        %s258 = sand.u32 %s172, 1
        %s259 = smul.addr %s258, 152
        %s260 = scalar_lea.vmem [#allocation7], %s259
        %s261 = smul.u32 38, %s28
        %p262 = scmp.lt.s32.totalorder %s261, 75
        %s263 = scalar_select %p262, %s261, 75
        %s264 = smul.addr %s263, 8
        %s265 = scalar_lea.vmem %s2, %s264
        %s266 = smul.u32 38, %s28
        %s267 = smul.u32 38, %s28
        %s268 = smul.u32 38, %s28
        %v269 = vld [vmem:[%s265] sm:$0xff]
        %v270 = vld [vmem:[%s265 + $0x8] sm:$0xff]
        %v271 = vld [vmem:[%s265 + $0x10] sm:$0xff]
        %v272 = vld [vmem:[%s265 + $0x18] sm:$0xff]
        %v273 = vld [vmem:[%s265 + $0x20] sm:$0xff]
        %v274 = vld [vmem:[%s265 + $0x28] sm:$0xff]
        %v275 = vld [vmem:[%s265 + $0x30] sm:$0xff]
        %v276 = vld [vmem:[%s265 + $0x38] sm:$0xff]
        %v277 = vld [vmem:[%s265 + $0x40] sm:$0xff]
        %v278 = vld [vmem:[%s265 + $0x48] sm:$0xff]
        %v279 = vld [vmem:[%s265 + $0x50] sm:$0xff]
        %v280 = vld [vmem:[%s265 + $0x58] sm:$0xff]
        %v281 = vld [vmem:[%s265 + $0x60] sm:$0xff]
        %v282 = vld [vmem:[%s265 + $0x68] sm:$0xff]
        %v283 = vld [vmem:[%s265 + $0x70] sm:$0xff]
        %v284 = vld [vmem:[%s265 + $0x78] sm:$0xff]
        %v285 = vld [vmem:[%s265 + $0x80] sm:$0xff]
        %v286 = vld [vmem:[%s265 + $0x88] sm:$0xff]
        %v287 = vld [vmem:[%s265 + $0x90] sm:$0xff]
        %v288 = vld [vmem:[%s265 + $0x98] sm:$0xff]
        %v289 = vld [vmem:[%s265 + $0xa0] sm:$0xff]
        %v290 = vld [vmem:[%s265 + $0xa8] sm:$0xff]
        %v291 = vld [vmem:[%s265 + $0xb0] sm:$0xff]
        %v292 = vld [vmem:[%s265 + $0xb8] sm:$0xff]
        %v293 = vld [vmem:[%s265 + $0xc0] sm:$0xff]
        %v294 = vld [vmem:[%s265 + $0xc8] sm:$0xff]
        %v295 = vld [vmem:[%s265 + $0xd0] sm:$0xff]
        %v296 = vld [vmem:[%s265 + $0xd8] sm:$0xff]
        %v297 = vld [vmem:[%s265 + $0xe0] sm:$0xff]
        %v298 = vld [vmem:[%s265 + $0xe8] sm:$0xff]
        %v299 = vld [vmem:[%s265 + $0xf0] sm:$0xff]
        %v300 = vld [vmem:[%s265 + $0xf8] sm:$0xff]
        %v301 = vld [vmem:[%s265 + $0x100] sm:$0xff]
        %v302 = vld [vmem:[%s265 + $0x108] sm:$0xff]
        %v303 = vld [vmem:[%s265 + $0x110] sm:$0xff]
        %v304 = vld [vmem:[%s265 + $0x118] sm:$0xff]
        %v305 = vld [vmem:[%s265 + $0x120] sm:$0xff]
        %v306 = vld [vmem:[%s265 + $0x128] sm:$0xff]
        %v307 = vld [vmem:[%s3] sm:$0xff]
        %v308 = vld [vmem:[%s3 + $0x8] sm:$0xff]
        %v309 = vld [vmem:[%s3 + $0x10] sm:$0xff]
        %v310 = vld [vmem:[%s3 + $0x18] sm:$0xff]
        %v311 = vld [vmem:[%s4] sm:$0x1]
        %v313 = vlaneseq
        %v314 = vshrl.u32 %v313, 7
        %v315 = vsub.s32 0, %v314
        %v316 = vrot.slane %v311, %v315
        %vm318 = vcmask 261120
        %v320 = vsel %vm318, %v269, 0
        %v323 = vsel %vm318, %v270, 0
        %v326 = vsel %vm318, %v271, 0
        %v329 = vsel %vm318, %v272, 0
        %v332 = vsel %vm318, %v273, 0
        %v335 = vsel %vm318, %v274, 0
        %v338 = vsel %vm318, %v275, 0
        %v341 = vsel %vm318, %v276, 0
        %v344 = vsel %vm318, %v277, 0
        %v347 = vsel %vm318, %v278, 0
        %v350 = vsel %vm318, %v279, 0
        %v353 = vsel %vm318, %v280, 0
        %v356 = vsel %vm318, %v281, 0
        %v359 = vsel %vm318, %v282, 0
        %v362 = vsel %vm318, %v283, 0
        %v365 = vsel %vm318, %v284, 0
        %v368 = vsel %vm318, %v285, 0
        %v371 = vsel %vm318, %v286, 0
        %v374 = vsel %vm318, %v287, 0
        %v377 = vsel %vm318, %v288, 0
        %v380 = vsel %vm318, %v289, 0
        %v383 = vsel %vm318, %v290, 0
        %v386 = vsel %vm318, %v291, 0
        %v389 = vsel %vm318, %v292, 0
        %v392 = vsel %vm318, %v293, 0
        %v395 = vsel %vm318, %v294, 0
        %v398 = vsel %vm318, %v295, 0
        %v401 = vsel %vm318, %v296, 0
        %v404 = vsel %vm318, %v297, 0
        %v407 = vsel %vm318, %v298, 0
        %v410 = vsel %vm318, %v299, 0
        %v413 = vsel %vm318, %v300, 0
        %v416 = vsel %vm318, %v301, 0
        %v419 = vsel %vm318, %v302, 0
        %v422 = vsel %vm318, %v303, 0
        %v425 = vsel %vm318, %v304, 0
        %v428 = vsel %vm318, %v305, 0
        %v431 = vsel %vm318, %v306, 0
        %433 = vmatprep.subr.mxu0 0.0
        %434 = vmatpush1.msra.mxu0 0.0
        %435 = vmatprep.subr.mxu0 0.0
        %436 = vmatpush1.msra.mxu0 0.0
        %437 = vmatprep.subr.mxu0 0.0
        %438 = vmatpush1.msra.mxu0 0.0
        %439 = vmatprep.subr.mxu0 0.0
        %440 = vmatpush1.msra.mxu0 0.0
        %441 = vmatprep.subr.mxu0 0.0
        %442 = vmatpush1.msra.mxu0 0.0
        %443 = vmatprep.subr.mxu0 0.0
        %444 = vmatpush1.msra.mxu0 0.0
        %445 = vmatprep.subr.mxu0 0.0
        %446 = vmatpush1.msra.mxu0 0.0
        %447 = vmatprep.subr.mxu0 0.0
        %448 = vmatpush1.msra.mxu0 0.0
        %449 = vmatprep.subr.mxu0 0.0
        %450 = vmatpush1.msra.mxu0 0.0
        %451 = vmatprep.subr.mxu0 0.0
        %452 = vmatpush1.msra.mxu0 0.0
        %453 = vmatprep.subr.mxu0 0.0
        %454 = vmatpush1.msra.mxu0 0.0
        %455 = vmatprep.subr.mxu0 0.0
        %456 = vmatpush1.msra.mxu0 0.0
        %457 = vmatprep.subr.mxu0 0.0
        %458 = vmatpush1.msra.mxu0 %v310
        %459 = vmatprep.subr.mxu0 0.0
        %460 = vmatpush1.msra.mxu0 %v309
        %461 = vmatprep.subr.mxu0 0.0
        %462 = vmatpush1.msra.mxu0 %v308
        %463 = vmatprep.subr.mxu0 0.0
        %464 = vmatpush1.msra.mxu0 %v307
        %465 = vmatprep.subr.mxu0 0.0
        %466 = vmatpush2.msra.mxu0 0.0
        %467 = vmatprep.subr.mxu0 0.0
        %468 = vmatpush2.msra.mxu0 0.0
        %469 = vmatprep.subr.mxu0 0.0
        %470 = vmatpush2.msra.mxu0 0.0
        %471 = vmatprep.subr.mxu0 0.0
        %472 = vmatpush2.msra.mxu0 0.0
        %473 = vmatprep.subr.mxu0 0.0
        %474 = vmatpush2.msra.mxu0 0.0
        %475 = vmatprep.subr.mxu0 0.0
        %476 = vmatpush2.msra.mxu0 0.0
        %477 = vmatprep.subr.mxu0 0.0
        %478 = vmatpush2.msra.mxu0 0.0
        %479 = vmatprep.subr.mxu0 0.0
        %480 = vmatpush2.msra.mxu0 0.0
        %481 = vmatprep.subr.mxu0 0.0
        %482 = vmatpush2.msra.mxu0 0.0
        %483 = vmatprep.subr.mxu0 0.0
        %484 = vmatpush2.msra.mxu0 0.0
        %485 = vmatprep.subr.mxu0 0.0
        %486 = vmatpush2.msra.mxu0 0.0
        %487 = vmatprep.subr.mxu0 0.0
        %488 = vmatpush2.msra.mxu0 0.0
        %489 = vmatprep.subr.mxu0 0.0
        %490 = vmatpush2.msra.mxu0 0.0
        %491 = vmatprep.subr.mxu0 0.0
        %492 = vmatpush2.msra.mxu0 0.0
        %493 = vmatprep.subr.mxu0 0.0
        %494 = vmatpush2.msra.mxu0 0.0
        %495 = vmatprep.subr.mxu0 0.0
        %496 = vmatpush2.msra.mxu0 0.0
        %497 = vmatprep.mubr.f32.mxu0 0.0
        %498 = vmatmul.mubr.f32.gmra.mxu0 %v320
        %v499 = vpop.f32.mrf.mxu0
        %v500 = vadd.f32 %v316, %v499
        %v501 = vpop.f32.mrf.mxu0
        %502 = vmatprep.mubr.f32.mxu0 0.0
        %503 = vmatmul.mubr.f32.gmra.mxu0 %v323
        %v504 = vpop.f32.mrf.mxu0
        %v505 = vadd.f32 %v316, %v504
        %v506 = vpop.f32.mrf.mxu0
        %507 = vmatprep.mubr.f32.mxu0 0.0
        %508 = vmatmul.mubr.f32.gmra.mxu0 %v326
        %v509 = vpop.f32.mrf.mxu0
        %v510 = vadd.f32 %v316, %v509
        %v511 = vpop.f32.mrf.mxu0
        %512 = vmatprep.mubr.f32.mxu0 0.0
        %513 = vmatmul.mubr.f32.gmra.mxu0 %v329
        %v514 = vpop.f32.mrf.mxu0
        %v515 = vadd.f32 %v316, %v514
        %v516 = vpop.f32.mrf.mxu0
        %517 = vmatprep.mubr.f32.mxu0 0.0
        %518 = vmatmul.mubr.f32.gmra.mxu0 %v332
        %v519 = vpop.f32.mrf.mxu0
        %v520 = vadd.f32 %v316, %v519
        %v521 = vpop.f32.mrf.mxu0
        %522 = vmatprep.mubr.f32.mxu0 0.0
        %523 = vmatmul.mubr.f32.gmra.mxu0 %v335
        %v524 = vpop.f32.mrf.mxu0
        %v525 = vadd.f32 %v316, %v524
        %v526 = vpop.f32.mrf.mxu0
        %527 = vmatprep.mubr.f32.mxu0 0.0
        %528 = vmatmul.mubr.f32.gmra.mxu0 %v338
        %v529 = vpop.f32.mrf.mxu0
        %v530 = vadd.f32 %v316, %v529
        %v531 = vpop.f32.mrf.mxu0
        %532 = vmatprep.mubr.f32.mxu0 0.0
        %533 = vmatmul.mubr.f32.gmra.mxu0 %v341
        %v534 = vpop.f32.mrf.mxu0
        %v535 = vadd.f32 %v316, %v534
        %v536 = vpop.f32.mrf.mxu0
        %537 = vmatprep.mubr.f32.mxu0 0.0
        %538 = vmatmul.mubr.f32.gmra.mxu0 %v344
        %v539 = vpop.f32.mrf.mxu0
        %v540 = vadd.f32 %v316, %v539
        %v541 = vpop.f32.mrf.mxu0
        %542 = vmatprep.mubr.f32.mxu0 0.0
        %543 = vmatmul.mubr.f32.gmra.mxu0 %v347
        %v544 = vpop.f32.mrf.mxu0
        %v545 = vadd.f32 %v316, %v544
        %v546 = vpop.f32.mrf.mxu0
        %547 = vmatprep.mubr.f32.mxu0 0.0
        %548 = vmatmul.mubr.f32.gmra.mxu0 %v350
        %v549 = vpop.f32.mrf.mxu0
        %v550 = vadd.f32 %v316, %v549
        %v551 = vpop.f32.mrf.mxu0
        %552 = vmatprep.mubr.f32.mxu0 0.0
        %553 = vmatmul.mubr.f32.gmra.mxu0 %v353
        %v554 = vpop.f32.mrf.mxu0
        %v555 = vadd.f32 %v316, %v554
        %v556 = vpop.f32.mrf.mxu0
        %557 = vmatprep.mubr.f32.mxu0 0.0
        %558 = vmatmul.mubr.f32.gmra.mxu0 %v356
        %v559 = vpop.f32.mrf.mxu0
        %v560 = vadd.f32 %v316, %v559
        %v561 = vpop.f32.mrf.mxu0
        %562 = vmatprep.mubr.f32.mxu0 0.0
        %563 = vmatmul.mubr.f32.gmra.mxu0 %v359
        %v564 = vpop.f32.mrf.mxu0
        %v565 = vadd.f32 %v316, %v564
        %v566 = vpop.f32.mrf.mxu0
        %567 = vmatprep.mubr.f32.mxu0 0.0
        %568 = vmatmul.mubr.f32.gmra.mxu0 %v362
        %v569 = vpop.f32.mrf.mxu0
        %v570 = vadd.f32 %v316, %v569
        %v571 = vpop.f32.mrf.mxu0
        %572 = vmatprep.mubr.f32.mxu0 0.0
        %573 = vmatmul.mubr.f32.gmra.mxu0 %v365
        %v574 = vpop.f32.mrf.mxu0
        %v575 = vadd.f32 %v316, %v574
        %v576 = vpop.f32.mrf.mxu0
        %577 = vmatprep.mubr.f32.mxu0 0.0
        %578 = vmatmul.mubr.f32.gmra.mxu0 %v368
        %v579 = vpop.f32.mrf.mxu0
        %v580 = vadd.f32 %v316, %v579
        %v581 = vpop.f32.mrf.mxu0
        %582 = vmatprep.mubr.f32.mxu0 0.0
        %583 = vmatmul.mubr.f32.gmra.mxu0 %v371
        %v584 = vpop.f32.mrf.mxu0
        %v585 = vadd.f32 %v316, %v584
        %v586 = vpop.f32.mrf.mxu0
        %587 = vmatprep.mubr.f32.mxu0 0.0
        %588 = vmatmul.mubr.f32.gmra.mxu0 %v374
        %v589 = vpop.f32.mrf.mxu0
        %v590 = vadd.f32 %v316, %v589
        %v591 = vpop.f32.mrf.mxu0
        %592 = vmatprep.mubr.f32.mxu0 0.0
        %593 = vmatmul.mubr.f32.gmra.mxu0 %v377
        %v594 = vpop.f32.mrf.mxu0
        %v595 = vadd.f32 %v316, %v594
        %v596 = vpop.f32.mrf.mxu0
        %597 = vmatprep.mubr.f32.mxu0 0.0
        %598 = vmatmul.mubr.f32.gmra.mxu0 %v380
        %v599 = vpop.f32.mrf.mxu0
        %v600 = vadd.f32 %v316, %v599
        %v601 = vpop.f32.mrf.mxu0
        %602 = vmatprep.mubr.f32.mxu0 0.0
        %603 = vmatmul.mubr.f32.gmra.mxu0 %v383
        %v604 = vpop.f32.mrf.mxu0
        %v605 = vadd.f32 %v316, %v604
        %v606 = vpop.f32.mrf.mxu0
        %607 = vmatprep.mubr.f32.mxu0 0.0
        %608 = vmatmul.mubr.f32.gmra.mxu0 %v386
        %v609 = vpop.f32.mrf.mxu0
        %v610 = vadd.f32 %v316, %v609
        %v611 = vpop.f32.mrf.mxu0
        %612 = vmatprep.mubr.f32.mxu0 0.0
        %613 = vmatmul.mubr.f32.gmra.mxu0 %v389
        %v614 = vpop.f32.mrf.mxu0
        %v615 = vadd.f32 %v316, %v614
        %v616 = vpop.f32.mrf.mxu0
        %617 = vmatprep.mubr.f32.mxu0 0.0
        %618 = vmatmul.mubr.f32.gmra.mxu0 %v392
        %v619 = vpop.f32.mrf.mxu0
        %v620 = vadd.f32 %v316, %v619
        %v621 = vpop.f32.mrf.mxu0
        %622 = vmatprep.mubr.f32.mxu0 0.0
        %623 = vmatmul.mubr.f32.gmra.mxu0 %v395
        %v624 = vpop.f32.mrf.mxu0
        %v625 = vadd.f32 %v316, %v624
        %v626 = vpop.f32.mrf.mxu0
        %627 = vmatprep.mubr.f32.mxu0 0.0
        %628 = vmatmul.mubr.f32.gmra.mxu0 %v398
        %v629 = vpop.f32.mrf.mxu0
        %v630 = vadd.f32 %v316, %v629
        %v631 = vpop.f32.mrf.mxu0
        %632 = vmatprep.mubr.f32.mxu0 0.0
        %633 = vmatmul.mubr.f32.gmra.mxu0 %v401
        %v634 = vpop.f32.mrf.mxu0
        %v635 = vadd.f32 %v316, %v634
        %v636 = vpop.f32.mrf.mxu0
        %637 = vmatprep.mubr.f32.mxu0 0.0
        %638 = vmatmul.mubr.f32.gmra.mxu0 %v404
        %v639 = vpop.f32.mrf.mxu0
        %v640 = vadd.f32 %v316, %v639
        %v641 = vpop.f32.mrf.mxu0
        %642 = vmatprep.mubr.f32.mxu0 0.0
        %643 = vmatmul.mubr.f32.gmra.mxu0 %v407
        %v644 = vpop.f32.mrf.mxu0
        %v645 = vadd.f32 %v316, %v644
        %v646 = vpop.f32.mrf.mxu0
        %647 = vmatprep.mubr.f32.mxu0 0.0
        %648 = vmatmul.mubr.f32.gmra.mxu0 %v410
        %v649 = vpop.f32.mrf.mxu0
        %v650 = vadd.f32 %v316, %v649
        %v651 = vpop.f32.mrf.mxu0
        %652 = vmatprep.mubr.f32.mxu0 0.0
        %653 = vmatmul.mubr.f32.gmra.mxu0 %v413
        %v654 = vpop.f32.mrf.mxu0
        %v655 = vadd.f32 %v316, %v654
        %v656 = vpop.f32.mrf.mxu0
        %657 = vmatprep.mubr.f32.mxu0 0.0
        %658 = vmatmul.mubr.f32.gmra.mxu0 %v416
        %v659 = vpop.f32.mrf.mxu0
        %v660 = vadd.f32 %v316, %v659
        %v661 = vpop.f32.mrf.mxu0
        %662 = vmatprep.mubr.f32.mxu0 0.0
        %663 = vmatmul.mubr.f32.gmra.mxu0 %v419
        %v664 = vpop.f32.mrf.mxu0
        %v665 = vadd.f32 %v316, %v664
        %v666 = vpop.f32.mrf.mxu0
        %667 = vmatprep.mubr.f32.mxu0 0.0
        %668 = vmatmul.mubr.f32.gmra.mxu0 %v422
        %v669 = vpop.f32.mrf.mxu0
        %v670 = vadd.f32 %v316, %v669
        %v671 = vpop.f32.mrf.mxu0
        %672 = vmatprep.mubr.f32.mxu0 0.0
        %673 = vmatmul.mubr.f32.gmra.mxu0 %v425
        %v674 = vpop.f32.mrf.mxu0
        %v675 = vadd.f32 %v316, %v674
        %v676 = vpop.f32.mrf.mxu0
        %677 = vmatprep.mubr.f32.mxu0 0.0
        %678 = vmatmul.mubr.f32.gmra.mxu0 %v428
        %v679 = vpop.f32.mrf.mxu0
        %v680 = vadd.f32 %v316, %v679
        %v681 = vpop.f32.mrf.mxu0
        %682 = vmatprep.mubr.f32.mxu0 0.0
        %683 = vmatmul.mubr.f32.gmra.mxu0 %v431
        %v684 = vpop.f32.mrf.mxu0
        %v685 = vadd.f32 %v316, %v684
        %v686 = vpop.f32.mrf.mxu0
        %687 = vdwg.mxu0
        %v688 = vld [vmem:[%s5] sm:$0xff]
        %v689 = vld [vmem:[%s5 + $0x8] sm:$0xff]
        %v690 = vld [vmem:[%s5 + $0x10] sm:$0xff]
        %v691 = vld [vmem:[%s5 + $0x18] sm:$0xff]
        %v692 = vld [vmem:[%s6] sm:$0x1]
        %v694 = vlaneseq
        %v695 = vshrl.u32 %v694, 7
        %v696 = vsub.s32 0, %v695
        %v697 = vrot.slane %v692, %v696
        %699 = vmatprep.subr.mxu0 0.0
        %700 = vmatpush1.msra.mxu0 0.0
        %701 = vmatprep.subr.mxu0 0.0
        %702 = vmatpush1.msra.mxu0 0.0
        %703 = vmatprep.subr.mxu0 0.0
        %704 = vmatpush1.msra.mxu0 0.0
        %705 = vmatprep.subr.mxu0 0.0
        %706 = vmatpush1.msra.mxu0 0.0
        %707 = vmatprep.subr.mxu0 0.0
        %708 = vmatpush1.msra.mxu0 0.0
        %709 = vmatprep.subr.mxu0 0.0
        %710 = vmatpush1.msra.mxu0 0.0
        %711 = vmatprep.subr.mxu0 0.0
        %712 = vmatpush1.msra.mxu0 0.0
        %713 = vmatprep.subr.mxu0 0.0
        %714 = vmatpush1.msra.mxu0 0.0
        %715 = vmatprep.subr.mxu0 0.0
        %716 = vmatpush1.msra.mxu0 0.0
        %717 = vmatprep.subr.mxu0 0.0
        %718 = vmatpush1.msra.mxu0 0.0
        %719 = vmatprep.subr.mxu0 0.0
        %720 = vmatpush1.msra.mxu0 0.0
        %721 = vmatprep.subr.mxu0 0.0
        %722 = vmatpush1.msra.mxu0 0.0
        %723 = vmatprep.subr.mxu0 0.0
        %724 = vmatpush1.msra.mxu0 %v691
        %725 = vmatprep.subr.mxu0 0.0
        %726 = vmatpush1.msra.mxu0 %v690
        %727 = vmatprep.subr.mxu0 0.0
        %728 = vmatpush1.msra.mxu0 %v689
        %729 = vmatprep.subr.mxu0 0.0
        %730 = vmatpush1.msra.mxu0 %v688
        %731 = vmatprep.subr.mxu0 0.0
        %732 = vmatpush2.msra.mxu0 0.0
        %733 = vmatprep.subr.mxu0 0.0
        %734 = vmatpush2.msra.mxu0 0.0
        %735 = vmatprep.subr.mxu0 0.0
        %736 = vmatpush2.msra.mxu0 0.0
        %737 = vmatprep.subr.mxu0 0.0
        %738 = vmatpush2.msra.mxu0 0.0
        %739 = vmatprep.subr.mxu0 0.0
        %740 = vmatpush2.msra.mxu0 0.0
        %741 = vmatprep.subr.mxu0 0.0
        %742 = vmatpush2.msra.mxu0 0.0
        %743 = vmatprep.subr.mxu0 0.0
        %744 = vmatpush2.msra.mxu0 0.0
        %745 = vmatprep.subr.mxu0 0.0
        %746 = vmatpush2.msra.mxu0 0.0
        %747 = vmatprep.subr.mxu0 0.0
        %748 = vmatpush2.msra.mxu0 0.0
        %749 = vmatprep.subr.mxu0 0.0
        %750 = vmatpush2.msra.mxu0 0.0
        %751 = vmatprep.subr.mxu0 0.0
        %752 = vmatpush2.msra.mxu0 0.0
        %753 = vmatprep.subr.mxu0 0.0
        %754 = vmatpush2.msra.mxu0 0.0
        %755 = vmatprep.subr.mxu0 0.0
        %756 = vmatpush2.msra.mxu0 0.0
        %757 = vmatprep.subr.mxu0 0.0
        %758 = vmatpush2.msra.mxu0 0.0
        %759 = vmatprep.subr.mxu0 0.0
        %760 = vmatpush2.msra.mxu0 0.0
        %761 = vmatprep.subr.mxu0 0.0
        %762 = vmatpush2.msra.mxu0 0.0
        %763 = vmatprep.mubr.f32.mxu0 0.0
        %764 = vmatmul.mubr.f32.gmra.mxu0 %v320
        %v765 = vpop.f32.mrf.mxu0
        %v766 = vadd.f32 %v697, %v765
        %v767 = vpop.f32.mrf.mxu0
        %768 = vmatprep.mubr.f32.mxu0 0.0
        %769 = vmatmul.mubr.f32.gmra.mxu0 %v323
        %v770 = vpop.f32.mrf.mxu0
        %v771 = vadd.f32 %v697, %v770
        %v772 = vpop.f32.mrf.mxu0
        %773 = vmatprep.mubr.f32.mxu0 0.0
        %774 = vmatmul.mubr.f32.gmra.mxu0 %v326
        %v775 = vpop.f32.mrf.mxu0
        %v776 = vadd.f32 %v697, %v775
        %v777 = vpop.f32.mrf.mxu0
        %778 = vmatprep.mubr.f32.mxu0 0.0
        %779 = vmatmul.mubr.f32.gmra.mxu0 %v329
        %v780 = vpop.f32.mrf.mxu0
        %v781 = vadd.f32 %v697, %v780
        %v782 = vpop.f32.mrf.mxu0
        %783 = vmatprep.mubr.f32.mxu0 0.0
        %784 = vmatmul.mubr.f32.gmra.mxu0 %v332
        %v785 = vpop.f32.mrf.mxu0
        %v786 = vadd.f32 %v697, %v785
        %v787 = vpop.f32.mrf.mxu0
        %788 = vmatprep.mubr.f32.mxu0 0.0
        %789 = vmatmul.mubr.f32.gmra.mxu0 %v335
        %v790 = vpop.f32.mrf.mxu0
        %v791 = vadd.f32 %v697, %v790
        %v792 = vpop.f32.mrf.mxu0
        %793 = vmatprep.mubr.f32.mxu0 0.0
        %794 = vmatmul.mubr.f32.gmra.mxu0 %v338
        %v795 = vpop.f32.mrf.mxu0
        %v796 = vadd.f32 %v697, %v795
        %v797 = vpop.f32.mrf.mxu0
        %798 = vmatprep.mubr.f32.mxu0 0.0
        %799 = vmatmul.mubr.f32.gmra.mxu0 %v341
        %v800 = vpop.f32.mrf.mxu0
        %v801 = vadd.f32 %v697, %v800
        %v802 = vpop.f32.mrf.mxu0
        %803 = vmatprep.mubr.f32.mxu0 0.0
        %804 = vmatmul.mubr.f32.gmra.mxu0 %v344
        %v805 = vpop.f32.mrf.mxu0
        %v806 = vadd.f32 %v697, %v805
        %v807 = vpop.f32.mrf.mxu0
        %808 = vmatprep.mubr.f32.mxu0 0.0
        %809 = vmatmul.mubr.f32.gmra.mxu0 %v347
        %v810 = vpop.f32.mrf.mxu0
        %v811 = vadd.f32 %v697, %v810
        %v812 = vpop.f32.mrf.mxu0
        %813 = vmatprep.mubr.f32.mxu0 0.0
        %814 = vmatmul.mubr.f32.gmra.mxu0 %v350
        %v815 = vpop.f32.mrf.mxu0
        %v816 = vadd.f32 %v697, %v815
        %v817 = vpop.f32.mrf.mxu0
        %818 = vmatprep.mubr.f32.mxu0 0.0
        %819 = vmatmul.mubr.f32.gmra.mxu0 %v353
        %v820 = vpop.f32.mrf.mxu0
        %v821 = vadd.f32 %v697, %v820
        %v822 = vpop.f32.mrf.mxu0
        %823 = vmatprep.mubr.f32.mxu0 0.0
        %824 = vmatmul.mubr.f32.gmra.mxu0 %v356
        %v825 = vpop.f32.mrf.mxu0
        %v826 = vadd.f32 %v697, %v825
        %v827 = vpop.f32.mrf.mxu0
        %828 = vmatprep.mubr.f32.mxu0 0.0
        %829 = vmatmul.mubr.f32.gmra.mxu0 %v359
        %v830 = vpop.f32.mrf.mxu0
        %v831 = vadd.f32 %v697, %v830
        %v832 = vpop.f32.mrf.mxu0
        %833 = vmatprep.mubr.f32.mxu0 0.0
        %834 = vmatmul.mubr.f32.gmra.mxu0 %v362
        %v835 = vpop.f32.mrf.mxu0
        %v836 = vadd.f32 %v697, %v835
        %v837 = vpop.f32.mrf.mxu0
        %838 = vmatprep.mubr.f32.mxu0 0.0
        %839 = vmatmul.mubr.f32.gmra.mxu0 %v365
        %v840 = vpop.f32.mrf.mxu0
        %v841 = vadd.f32 %v697, %v840
        %v842 = vpop.f32.mrf.mxu0
        %843 = vmatprep.mubr.f32.mxu0 0.0
        %844 = vmatmul.mubr.f32.gmra.mxu0 %v368
        %v845 = vpop.f32.mrf.mxu0
        %v846 = vadd.f32 %v697, %v845
        %v847 = vpop.f32.mrf.mxu0
        %848 = vmatprep.mubr.f32.mxu0 0.0
        %849 = vmatmul.mubr.f32.gmra.mxu0 %v371
        %v850 = vpop.f32.mrf.mxu0
        %v851 = vadd.f32 %v697, %v850
        %v852 = vpop.f32.mrf.mxu0
        %853 = vmatprep.mubr.f32.mxu0 0.0
        %854 = vmatmul.mubr.f32.gmra.mxu0 %v374
        %v855 = vpop.f32.mrf.mxu0
        %v856 = vadd.f32 %v697, %v855
        %v857 = vpop.f32.mrf.mxu0
        %858 = vmatprep.mubr.f32.mxu0 0.0
        %859 = vmatmul.mubr.f32.gmra.mxu0 %v377
        %v860 = vpop.f32.mrf.mxu0
        %v861 = vadd.f32 %v697, %v860
        %v862 = vpop.f32.mrf.mxu0
        %863 = vmatprep.mubr.f32.mxu0 0.0
        %864 = vmatmul.mubr.f32.gmra.mxu0 %v380
        %v865 = vpop.f32.mrf.mxu0
        %v866 = vadd.f32 %v697, %v865
        %v867 = vpop.f32.mrf.mxu0
        %868 = vmatprep.mubr.f32.mxu0 0.0
        %869 = vmatmul.mubr.f32.gmra.mxu0 %v383
        %v870 = vpop.f32.mrf.mxu0
        %v871 = vadd.f32 %v697, %v870
        %v872 = vpop.f32.mrf.mxu0
        %873 = vmatprep.mubr.f32.mxu0 0.0
        %874 = vmatmul.mubr.f32.gmra.mxu0 %v386
        %v875 = vpop.f32.mrf.mxu0
        %v876 = vadd.f32 %v697, %v875
        %v877 = vpop.f32.mrf.mxu0
        %878 = vmatprep.mubr.f32.mxu0 0.0
        %879 = vmatmul.mubr.f32.gmra.mxu0 %v389
        %v880 = vpop.f32.mrf.mxu0
        %v881 = vadd.f32 %v697, %v880
        %v882 = vpop.f32.mrf.mxu0
        %883 = vmatprep.mubr.f32.mxu0 0.0
        %884 = vmatmul.mubr.f32.gmra.mxu0 %v392
        %v885 = vpop.f32.mrf.mxu0
        %v886 = vadd.f32 %v697, %v885
        %v887 = vpop.f32.mrf.mxu0
        %888 = vmatprep.mubr.f32.mxu0 0.0
        %889 = vmatmul.mubr.f32.gmra.mxu0 %v395
        %v890 = vpop.f32.mrf.mxu0
        %v891 = vadd.f32 %v697, %v890
        %v892 = vpop.f32.mrf.mxu0
        %893 = vmatprep.mubr.f32.mxu0 0.0
        %894 = vmatmul.mubr.f32.gmra.mxu0 %v398
        %v895 = vpop.f32.mrf.mxu0
        %v896 = vadd.f32 %v697, %v895
        %v897 = vpop.f32.mrf.mxu0
        %898 = vmatprep.mubr.f32.mxu0 0.0
        %899 = vmatmul.mubr.f32.gmra.mxu0 %v401
        %v900 = vpop.f32.mrf.mxu0
        %v901 = vadd.f32 %v697, %v900
        %v902 = vpop.f32.mrf.mxu0
        %903 = vmatprep.mubr.f32.mxu0 0.0
        %904 = vmatmul.mubr.f32.gmra.mxu0 %v404
        %v905 = vpop.f32.mrf.mxu0
        %v906 = vadd.f32 %v697, %v905
        %v907 = vpop.f32.mrf.mxu0
        %908 = vmatprep.mubr.f32.mxu0 0.0
        %909 = vmatmul.mubr.f32.gmra.mxu0 %v407
        %v910 = vpop.f32.mrf.mxu0
        %v911 = vadd.f32 %v697, %v910
        %v912 = vpop.f32.mrf.mxu0
        %913 = vmatprep.mubr.f32.mxu0 0.0
        %914 = vmatmul.mubr.f32.gmra.mxu0 %v410
        %v915 = vpop.f32.mrf.mxu0
        %v916 = vadd.f32 %v697, %v915
        %v917 = vpop.f32.mrf.mxu0
        %918 = vmatprep.mubr.f32.mxu0 0.0
        %919 = vmatmul.mubr.f32.gmra.mxu0 %v413
        %v920 = vpop.f32.mrf.mxu0
        %v921 = vadd.f32 %v697, %v920
        %v922 = vpop.f32.mrf.mxu0
        %923 = vmatprep.mubr.f32.mxu0 0.0
        %924 = vmatmul.mubr.f32.gmra.mxu0 %v416
        %v925 = vpop.f32.mrf.mxu0
        %v926 = vadd.f32 %v697, %v925
        %v927 = vpop.f32.mrf.mxu0
        %928 = vmatprep.mubr.f32.mxu0 0.0
        %929 = vmatmul.mubr.f32.gmra.mxu0 %v419
        %v930 = vpop.f32.mrf.mxu0
        %v931 = vadd.f32 %v697, %v930
        %v932 = vpop.f32.mrf.mxu0
        %933 = vmatprep.mubr.f32.mxu0 0.0
        %934 = vmatmul.mubr.f32.gmra.mxu0 %v422
        %v935 = vpop.f32.mrf.mxu0
        %v936 = vadd.f32 %v697, %v935
        %v937 = vpop.f32.mrf.mxu0
        %938 = vmatprep.mubr.f32.mxu0 0.0
        %939 = vmatmul.mubr.f32.gmra.mxu0 %v425
        %v940 = vpop.f32.mrf.mxu0
        %v941 = vadd.f32 %v697, %v940
        %v942 = vpop.f32.mrf.mxu0
        %943 = vmatprep.mubr.f32.mxu0 0.0
        %944 = vmatmul.mubr.f32.gmra.mxu0 %v428
        %v945 = vpop.f32.mrf.mxu0
        %v946 = vadd.f32 %v697, %v945
        %v947 = vpop.f32.mrf.mxu0
        %948 = vmatprep.mubr.f32.mxu0 0.0
        %949 = vmatmul.mubr.f32.gmra.mxu0 %v431
        %v950 = vpop.f32.mrf.mxu0
        %v951 = vadd.f32 %v697, %v950
        %v952 = vpop.f32.mrf.mxu0
        %953 = vdwg.mxu0
        %s954 = sld [smem:[#allocation4]]
        %v955 = vstv %s954
        %vm956 = vcmp.gt.f32.partialorder %v766, %v955
        %vm957 = vcmp.gt.f32.partialorder %v771, %v955
        %vm958 = vcmp.gt.f32.partialorder %v776, %v955
        %vm959 = vcmp.gt.f32.partialorder %v781, %v955
        %vm960 = vcmp.gt.f32.partialorder %v786, %v955
        %vm961 = vcmp.gt.f32.partialorder %v791, %v955
        %vm962 = vcmp.gt.f32.partialorder %v796, %v955
        %vm963 = vcmp.gt.f32.partialorder %v801, %v955
        %vm964 = vcmp.gt.f32.partialorder %v806, %v955
        %vm965 = vcmp.gt.f32.partialorder %v811, %v955
        %vm966 = vcmp.gt.f32.partialorder %v816, %v955
        %vm967 = vcmp.gt.f32.partialorder %v821, %v955
        %vm968 = vcmp.gt.f32.partialorder %v826, %v955
        %vm969 = vcmp.gt.f32.partialorder %v831, %v955
        %vm970 = vcmp.gt.f32.partialorder %v836, %v955
        %vm971 = vcmp.gt.f32.partialorder %v841, %v955
        %vm972 = vcmp.gt.f32.partialorder %v846, %v955
        %vm973 = vcmp.gt.f32.partialorder %v851, %v955
        %vm974 = vcmp.gt.f32.partialorder %v856, %v955
        %vm975 = vcmp.gt.f32.partialorder %v861, %v955
        %vm976 = vcmp.gt.f32.partialorder %v866, %v955
        %vm977 = vcmp.gt.f32.partialorder %v871, %v955
        %vm978 = vcmp.gt.f32.partialorder %v876, %v955
        %vm979 = vcmp.gt.f32.partialorder %v881, %v955
        %vm980 = vcmp.gt.f32.partialorder %v886, %v955
        %vm981 = vcmp.gt.f32.partialorder %v891, %v955
        %vm982 = vcmp.gt.f32.partialorder %v896, %v955
        %vm983 = vcmp.gt.f32.partialorder %v901, %v955
        %vm984 = vcmp.gt.f32.partialorder %v906, %v955
        %vm985 = vcmp.gt.f32.partialorder %v911, %v955
        %vm986 = vcmp.gt.f32.partialorder %v916, %v955
        %vm987 = vcmp.gt.f32.partialorder %v921, %v955
        %vm988 = vcmp.gt.f32.partialorder %v926, %v955
        %vm989 = vcmp.gt.f32.partialorder %v931, %v955
        %vm990 = vcmp.gt.f32.partialorder %v936, %v955
        %vm991 = vcmp.gt.f32.partialorder %v941, %v955
        %vm992 = vcmp.gt.f32.partialorder %v946, %v955
        %vm993 = vcmp.gt.f32.partialorder %v951, %v955
        %v994 = vsel %vm956, 1, 0
        %v995 = vsel %vm957, 1, 0
        %v996 = vsel %vm958, 1, 0
        %v997 = vsel %vm959, 1, 0
        %v998 = vsel %vm960, 1, 0
        %v999 = vsel %vm961, 1, 0
        %v1000 = vsel %vm962, 1, 0
        %v1001 = vsel %vm963, 1, 0
        %v1002 = vsel %vm964, 1, 0
        %v1003 = vsel %vm965, 1, 0
        %v1004 = vsel %vm966, 1, 0
        %v1005 = vsel %vm967, 1, 0
        %v1006 = vsel %vm968, 1, 0
        %v1007 = vsel %vm969, 1, 0
        %v1008 = vsel %vm970, 1, 0
        %v1009 = vsel %vm971, 1, 0
        %v1010 = vsel %vm972, 1, 0
        %v1011 = vsel %vm973, 1, 0
        %v1012 = vsel %vm974, 1, 0
        %v1013 = vsel %vm975, 1, 0
        %v1014 = vsel %vm976, 1, 0
        %v1015 = vsel %vm977, 1, 0
        %v1016 = vsel %vm978, 1, 0
        %v1017 = vsel %vm979, 1, 0
        %v1018 = vsel %vm980, 1, 0
        %v1019 = vsel %vm981, 1, 0
        %v1020 = vsel %vm982, 1, 0
        %v1021 = vsel %vm983, 1, 0
        %v1022 = vsel %vm984, 1, 0
        %v1023 = vsel %vm985, 1, 0
        %v1024 = vsel %vm986, 1, 0
        %v1025 = vsel %vm987, 1, 0
        %v1026 = vsel %vm988, 1, 0
        %v1027 = vsel %vm989, 1, 0
        %v1028 = vsel %vm990, 1, 0
        %v1029 = vsel %vm991, 1, 0
        %v1030 = vsel %vm992, 1, 0
        %v1031 = vsel %vm993, 1, 0
        %v1032 = vcvt.s32.f32 %v994
        %v1033 = vcvt.s32.f32 %v995
        %v1034 = vcvt.s32.f32 %v996
        %v1035 = vcvt.s32.f32 %v997
        %v1036 = vcvt.s32.f32 %v998
        %v1037 = vcvt.s32.f32 %v999
        %v1038 = vcvt.s32.f32 %v1000
        %v1039 = vcvt.s32.f32 %v1001
        %v1040 = vcvt.s32.f32 %v1002
        %v1041 = vcvt.s32.f32 %v1003
        %v1042 = vcvt.s32.f32 %v1004
        %v1043 = vcvt.s32.f32 %v1005
        %v1044 = vcvt.s32.f32 %v1006
        %v1045 = vcvt.s32.f32 %v1007
        %v1046 = vcvt.s32.f32 %v1008
        %v1047 = vcvt.s32.f32 %v1009
        %v1048 = vcvt.s32.f32 %v1010
        %v1049 = vcvt.s32.f32 %v1011
        %v1050 = vcvt.s32.f32 %v1012
        %v1051 = vcvt.s32.f32 %v1013
        %v1052 = vcvt.s32.f32 %v1014
        %v1053 = vcvt.s32.f32 %v1015
        %v1054 = vcvt.s32.f32 %v1016
        %v1055 = vcvt.s32.f32 %v1017
        %v1056 = vcvt.s32.f32 %v1018
        %v1057 = vcvt.s32.f32 %v1019
        %v1058 = vcvt.s32.f32 %v1020
        %v1059 = vcvt.s32.f32 %v1021
        %v1060 = vcvt.s32.f32 %v1022
        %v1061 = vcvt.s32.f32 %v1023
        %v1062 = vcvt.s32.f32 %v1024
        %v1063 = vcvt.s32.f32 %v1025
        %v1064 = vcvt.s32.f32 %v1026
        %v1065 = vcvt.s32.f32 %v1027
        %v1066 = vcvt.s32.f32 %v1028
        %v1067 = vcvt.s32.f32 %v1029
        %v1068 = vcvt.s32.f32 %v1030
        %v1069 = vcvt.s32.f32 %v1031
        %v1070 = vpack.c.bf16 %v1033, %v1032
        %v1071 = vpack.c.bf16 %v1035, %v1034
        %v1072 = vpack.c.bf16 %v1037, %v1036
        %v1073 = vpack.c.bf16 %v1039, %v1038
        %v1074 = vpack.c.bf16 %v1041, %v1040
        %v1075 = vpack.c.bf16 %v1043, %v1042
        %v1076 = vpack.c.bf16 %v1045, %v1044
        %v1077 = vpack.c.bf16 %v1047, %v1046
        %v1078 = vpack.c.bf16 %v1049, %v1048
        %v1079 = vpack.c.bf16 %v1051, %v1050
        %v1080 = vpack.c.bf16 %v1053, %v1052
        %v1081 = vpack.c.bf16 %v1055, %v1054
        %v1082 = vpack.c.bf16 %v1057, %v1056
        %v1083 = vpack.c.bf16 %v1059, %v1058
        %v1084 = vpack.c.bf16 %v1061, %v1060
        %v1085 = vpack.c.bf16 %v1063, %v1062
        %v1086 = vpack.c.bf16 %v1065, %v1064
        %v1087 = vpack.c.bf16 %v1067, %v1066
        %v1088 = vpack.c.bf16 %v1069, %v1068
        %v1108 = vunpack.c.l.b16 %v1070
        %v1109 = vunpack.c.h.b16 %v1070
        %v1110 = vunpack.c.l.b16 %v1071
        %v1111 = vunpack.c.h.b16 %v1071
        %v1112 = vunpack.c.l.b16 %v1072
        %v1113 = vunpack.c.h.b16 %v1072
        %v1114 = vunpack.c.l.b16 %v1073
        %v1115 = vunpack.c.h.b16 %v1073
        %v1116 = vunpack.c.l.b16 %v1074
        %v1117 = vunpack.c.h.b16 %v1074
        %v1118 = vunpack.c.l.b16 %v1075
        %v1119 = vunpack.c.h.b16 %v1075
        %v1120 = vunpack.c.l.b16 %v1076
        %v1121 = vunpack.c.h.b16 %v1076
        %v1122 = vunpack.c.l.b16 %v1077
        %v1123 = vunpack.c.h.b16 %v1077
        %v1124 = vunpack.c.l.b16 %v1078
        %v1125 = vunpack.c.h.b16 %v1078
        %v1126 = vunpack.c.l.b16 %v1079
        %v1127 = vunpack.c.h.b16 %v1079
        %v1128 = vunpack.c.l.b16 %v1080
        %v1129 = vunpack.c.h.b16 %v1080
        %v1130 = vunpack.c.l.b16 %v1081
        %v1131 = vunpack.c.h.b16 %v1081
        %v1132 = vunpack.c.l.b16 %v1082
        %v1133 = vunpack.c.h.b16 %v1082
        %v1134 = vunpack.c.l.b16 %v1083
        %v1135 = vunpack.c.h.b16 %v1083
        %v1136 = vunpack.c.l.b16 %v1084
        %v1137 = vunpack.c.h.b16 %v1084
        %v1138 = vunpack.c.l.b16 %v1085
        %v1139 = vunpack.c.h.b16 %v1085
        %v1140 = vunpack.c.l.b16 %v1086
        %v1141 = vunpack.c.h.b16 %v1086
        %v1142 = vunpack.c.l.b16 %v1087
        %v1143 = vunpack.c.h.b16 %v1087
        %v1144 = vunpack.c.l.b16 %v1088
        %v1145 = vunpack.c.h.b16 %v1088
        %v1146 = vpack.c.b16 %v1108, %v1108
        %v1147 = vpack.c.b16 %v1109, %v1109
        %v1148 = vpack.c.b16 %v1110, %v1110
        %v1149 = vpack.c.b16 %v1111, %v1111
        %v1150 = vpack.c.b16 %v1112, %v1112
        %v1151 = vpack.c.b16 %v1113, %v1113
        %v1152 = vpack.c.b16 %v1114, %v1114
        %v1153 = vpack.c.b16 %v1115, %v1115
        %v1154 = vpack.c.b16 %v1116, %v1116
        %v1155 = vpack.c.b16 %v1117, %v1117
        %v1156 = vpack.c.b16 %v1118, %v1118
        %v1157 = vpack.c.b16 %v1119, %v1119
        %v1158 = vpack.c.b16 %v1120, %v1120
        %v1159 = vpack.c.b16 %v1121, %v1121
        %v1160 = vpack.c.b16 %v1122, %v1122
        %v1161 = vpack.c.b16 %v1123, %v1123
        %v1162 = vpack.c.b16 %v1124, %v1124
        %v1163 = vpack.c.b16 %v1125, %v1125
        %v1164 = vpack.c.b16 %v1126, %v1126
        %v1165 = vpack.c.b16 %v1127, %v1127
        %v1166 = vpack.c.b16 %v1128, %v1128
        %v1167 = vpack.c.b16 %v1129, %v1129
        %v1168 = vpack.c.b16 %v1130, %v1130
        %v1169 = vpack.c.b16 %v1131, %v1131
        %v1170 = vpack.c.b16 %v1132, %v1132
        %v1171 = vpack.c.b16 %v1133, %v1133
        %v1172 = vpack.c.b16 %v1134, %v1134
        %v1173 = vpack.c.b16 %v1135, %v1135
        %v1174 = vpack.c.b16 %v1136, %v1136
        %v1175 = vpack.c.b16 %v1137, %v1137
        %v1176 = vpack.c.b16 %v1138, %v1138
        %v1177 = vpack.c.b16 %v1139, %v1139
        %v1178 = vpack.c.b16 %v1140, %v1140
        %v1179 = vpack.c.b16 %v1141, %v1141
        %v1180 = vpack.c.b16 %v1142, %v1142
        %v1181 = vpack.c.b16 %v1143, %v1143
        %v1182 = vpack.c.b16 %v1144, %v1144
        %v1183 = vpack.c.b16 %v1145, %v1145
        %1222 = vst [vmem:[%s260] sm:$0xf] %v1146
        %1223 = vst [vmem:[%s260 + $0x4] sm:$0xf] %v1147
        %1224 = vst [vmem:[%s260 + $0x8] sm:$0xf] %v1148
        %1225 = vst [vmem:[%s260 + $0xc] sm:$0xf] %v1149
        %1226 = vst [vmem:[%s260 + $0x10] sm:$0xf] %v1150
        %1227 = vst [vmem:[%s260 + $0x14] sm:$0xf] %v1151
        %1228 = vst [vmem:[%s260 + $0x18] sm:$0xf] %v1152
        %1229 = vst [vmem:[%s260 + $0x1c] sm:$0xf] %v1153
        %1230 = vst [vmem:[%s260 + $0x20] sm:$0xf] %v1154
        %1231 = vst [vmem:[%s260 + $0x24] sm:$0xf] %v1155
        %1232 = vst [vmem:[%s260 + $0x28] sm:$0xf] %v1156
        %1233 = vst [vmem:[%s260 + $0x2c] sm:$0xf] %v1157
        %1234 = vst [vmem:[%s260 + $0x30] sm:$0xf] %v1158
        %1235 = vst [vmem:[%s260 + $0x34] sm:$0xf] %v1159
        %1236 = vst [vmem:[%s260 + $0x38] sm:$0xf] %v1160
        %1237 = vst [vmem:[%s260 + $0x3c] sm:$0xf] %v1161
        %1238 = vst [vmem:[%s260 + $0x40] sm:$0xf] %v1162
        %1239 = vst [vmem:[%s260 + $0x44] sm:$0xf] %v1163
        %1240 = vst [vmem:[%s260 + $0x48] sm:$0xf] %v1164
        %1241 = vst [vmem:[%s260 + $0x4c] sm:$0xf] %v1165
        %1242 = vst [vmem:[%s260 + $0x50] sm:$0xf] %v1166
        %1243 = vst [vmem:[%s260 + $0x54] sm:$0xf] %v1167
        %1244 = vst [vmem:[%s260 + $0x58] sm:$0xf] %v1168
        %1245 = vst [vmem:[%s260 + $0x5c] sm:$0xf] %v1169
        %1246 = vst [vmem:[%s260 + $0x60] sm:$0xf] %v1170
        %1247 = vst [vmem:[%s260 + $0x64] sm:$0xf] %v1171
        %1248 = vst [vmem:[%s260 + $0x68] sm:$0xf] %v1172
        %1249 = vst [vmem:[%s260 + $0x6c] sm:$0xf] %v1173
        %1250 = vst [vmem:[%s260 + $0x70] sm:$0xf] %v1174
        %1251 = vst [vmem:[%s260 + $0x74] sm:$0xf] %v1175
        %1252 = vst [vmem:[%s260 + $0x78] sm:$0xf] %v1176
        %1253 = vst [vmem:[%s260 + $0x7c] sm:$0xf] %v1177
        %1254 = vst [vmem:[%s260 + $0x80] sm:$0xf] %v1178
        %1255 = vst [vmem:[%s260 + $0x84] sm:$0xf] %v1179
        %1256 = vst [vmem:[%s260 + $0x88] sm:$0xf] %v1180
        %1257 = vst [vmem:[%s260 + $0x8c] sm:$0xf] %v1181
        %1258 = vst [vmem:[%s260 + $0x90] sm:$0xf] %v1182
        %1259 = vst [vmem:[%s260 + $0x94] sm:$0xf] %v1183
        %s1260 = sld [smem:[#allocation3]]
        %p1261 = scmp.ne.s32.totalorder %s1260, 0
        // Predicated region
        $region41: #{tpu_custom_call.1} parent=39 // pred_check
          %p1262 = pneg %p1261
        $region42: #{tpu_custom_call.1} parent=39 // pred_check_branch
          %1264 = sbr.rel (%p1262) target = $region44
        $region43: #{tpu_custom_call.1} parent=39 // pred_region
          %v1265 = vxor.u32 %v500, 2147483648
          %v1266 = vxor.u32 %v505, 2147483648
          %v1267 = vxor.u32 %v510, 2147483648
          %v1268 = vxor.u32 %v515, 2147483648
          %v1269 = vxor.u32 %v520, 2147483648
          %v1270 = vxor.u32 %v525, 2147483648
          %v1271 = vxor.u32 %v530, 2147483648
          %v1272 = vxor.u32 %v535, 2147483648
          %v1273 = vxor.u32 %v540, 2147483648
          %v1274 = vxor.u32 %v545, 2147483648
          %v1275 = vxor.u32 %v550, 2147483648
          %v1276 = vxor.u32 %v555, 2147483648
          %v1277 = vxor.u32 %v560, 2147483648
          %v1278 = vxor.u32 %v565, 2147483648
          %v1279 = vxor.u32 %v570, 2147483648
          %v1280 = vxor.u32 %v575, 2147483648
          %v1281 = vxor.u32 %v580, 2147483648
          %v1282 = vxor.u32 %v585, 2147483648
          %v1283 = vxor.u32 %v590, 2147483648
          %v1284 = vxor.u32 %v595, 2147483648
          %v1285 = vxor.u32 %v600, 2147483648
          %v1286 = vxor.u32 %v605, 2147483648
          %v1287 = vxor.u32 %v610, 2147483648
          %v1288 = vxor.u32 %v615, 2147483648
          %v1289 = vxor.u32 %v620, 2147483648
          %v1290 = vxor.u32 %v625, 2147483648
          %v1291 = vxor.u32 %v630, 2147483648
          %v1292 = vxor.u32 %v635, 2147483648
          %v1293 = vxor.u32 %v640, 2147483648
          %v1294 = vxor.u32 %v645, 2147483648
          %v1295 = vxor.u32 %v650, 2147483648
          %v1296 = vxor.u32 %v655, 2147483648
          %v1297 = vxor.u32 %v660, 2147483648
          %v1298 = vxor.u32 %v665, 2147483648
          %v1299 = vxor.u32 %v670, 2147483648
          %v1300 = vxor.u32 %v675, 2147483648
          %v1301 = vxor.u32 %v680, 2147483648
          %v1302 = vxor.u32 %v685, 2147483648
          %v1303 = vmul.f32 %v1265, 1.442695
          %v1304 = vpow.pop %v1303
          %v1305 = vmul.f32 %v1266, 1.442695
          %v1306 = vpow.pop %v1305
          %v1307 = vmul.f32 %v1267, 1.442695
          %v1308 = vpow.pop %v1307
          %v1309 = vmul.f32 %v1268, 1.442695
          %v1310 = vpow.pop %v1309
          %v1311 = vmul.f32 %v1269, 1.442695
          %v1312 = vpow.pop %v1311
          %v1313 = vmul.f32 %v1270, 1.442695
          %v1314 = vpow.pop %v1313
          %v1315 = vmul.f32 %v1271, 1.442695
          %v1316 = vpow.pop %v1315
          %v1317 = vmul.f32 %v1272, 1.442695
          %v1318 = vpow.pop %v1317
          %v1319 = vmul.f32 %v1273, 1.442695
          %v1320 = vpow.pop %v1319
          %v1321 = vmul.f32 %v1274, 1.442695
          %v1322 = vpow.pop %v1321
          %v1323 = vmul.f32 %v1275, 1.442695
          %v1324 = vpow.pop %v1323
          %v1325 = vmul.f32 %v1276, 1.442695
          %v1326 = vpow.pop %v1325
          %v1327 = vmul.f32 %v1277, 1.442695
          %v1328 = vpow.pop %v1327
          %v1329 = vmul.f32 %v1278, 1.442695
          %v1330 = vpow.pop %v1329
          %v1331 = vmul.f32 %v1279, 1.442695
          %v1332 = vpow.pop %v1331
          %v1333 = vmul.f32 %v1280, 1.442695
          %v1334 = vpow.pop %v1333
          %v1335 = vmul.f32 %v1281, 1.442695
          %v1336 = vpow.pop %v1335
          %v1337 = vmul.f32 %v1282, 1.442695
          %v1338 = vpow.pop %v1337
          %v1339 = vmul.f32 %v1283, 1.442695
          %v1340 = vpow.pop %v1339
          %v1341 = vmul.f32 %v1284, 1.442695
          %v1342 = vpow.pop %v1341
          %v1343 = vmul.f32 %v1285, 1.442695
          %v1344 = vpow.pop %v1343
          %v1345 = vmul.f32 %v1286, 1.442695
          %v1346 = vpow.pop %v1345
          %v1347 = vmul.f32 %v1287, 1.442695
          %v1348 = vpow.pop %v1347
          %v1349 = vmul.f32 %v1288, 1.442695
          %v1350 = vpow.pop %v1349
          %v1351 = vmul.f32 %v1289, 1.442695
          %v1352 = vpow.pop %v1351
          %v1353 = vmul.f32 %v1290, 1.442695
          %v1354 = vpow.pop %v1353
          %v1355 = vmul.f32 %v1291, 1.442695
          %v1356 = vpow.pop %v1355
          %v1357 = vmul.f32 %v1292, 1.442695
          %v1358 = vpow.pop %v1357
          %v1359 = vmul.f32 %v1293, 1.442695
          %v1360 = vpow.pop %v1359
          %v1361 = vmul.f32 %v1294, 1.442695
          %v1362 = vpow.pop %v1361
          %v1363 = vmul.f32 %v1295, 1.442695
          %v1364 = vpow.pop %v1363
          %v1365 = vmul.f32 %v1296, 1.442695
          %v1366 = vpow.pop %v1365
          %v1367 = vmul.f32 %v1297, 1.442695
          %v1368 = vpow.pop %v1367
          %v1369 = vmul.f32 %v1298, 1.442695
          %v1370 = vpow.pop %v1369
          %v1371 = vmul.f32 %v1299, 1.442695
          %v1372 = vpow.pop %v1371
          %v1373 = vmul.f32 %v1300, 1.442695
          %v1374 = vpow.pop %v1373
          %v1375 = vmul.f32 %v1301, 1.442695
          %v1376 = vpow.pop %v1375
          %v1377 = vmul.f32 %v1302, 1.442695
          %v1378 = vpow.pop %v1377
          %v1379 = vadd.f32 %v1304, 1.0
          %v1380 = vadd.f32 %v1306, 1.0
          %v1381 = vadd.f32 %v1308, 1.0
          %v1382 = vadd.f32 %v1310, 1.0
          %v1383 = vadd.f32 %v1312, 1.0
          %v1384 = vadd.f32 %v1314, 1.0
          %v1385 = vadd.f32 %v1316, 1.0
          %v1386 = vadd.f32 %v1318, 1.0
          %v1387 = vadd.f32 %v1320, 1.0
          %v1388 = vadd.f32 %v1322, 1.0
          %v1389 = vadd.f32 %v1324, 1.0
          %v1390 = vadd.f32 %v1326, 1.0
          %v1391 = vadd.f32 %v1328, 1.0
          %v1392 = vadd.f32 %v1330, 1.0
          %v1393 = vadd.f32 %v1332, 1.0
          %v1394 = vadd.f32 %v1334, 1.0
          %v1395 = vadd.f32 %v1336, 1.0
          %v1396 = vadd.f32 %v1338, 1.0
          %v1397 = vadd.f32 %v1340, 1.0
          %v1398 = vadd.f32 %v1342, 1.0
          %v1399 = vadd.f32 %v1344, 1.0
          %v1400 = vadd.f32 %v1346, 1.0
          %v1401 = vadd.f32 %v1348, 1.0
          %v1402 = vadd.f32 %v1350, 1.0
          %v1403 = vadd.f32 %v1352, 1.0
          %v1404 = vadd.f32 %v1354, 1.0
          %v1405 = vadd.f32 %v1356, 1.0
          %v1406 = vadd.f32 %v1358, 1.0
          %v1407 = vadd.f32 %v1360, 1.0
          %v1408 = vadd.f32 %v1362, 1.0
          %v1409 = vadd.f32 %v1364, 1.0
          %v1410 = vadd.f32 %v1366, 1.0
          %v1411 = vadd.f32 %v1368, 1.0
          %v1412 = vadd.f32 %v1370, 1.0
          %v1413 = vadd.f32 %v1372, 1.0
          %v1414 = vadd.f32 %v1374, 1.0
          %v1415 = vadd.f32 %v1376, 1.0
          %v1416 = vadd.f32 %v1378, 1.0
          %v1417 = vrcp.pop %v1379
          %v1418 = vmul.f32 1.0, %v1417
          %v1419 = vrcp.pop %v1380
          %v1420 = vmul.f32 1.0, %v1419
          %v1421 = vrcp.pop %v1381
          %v1422 = vmul.f32 1.0, %v1421
          %v1423 = vrcp.pop %v1382
          %v1424 = vmul.f32 1.0, %v1423
          %v1425 = vrcp.pop %v1383
          %v1426 = vmul.f32 1.0, %v1425
          %v1427 = vrcp.pop %v1384
          %v1428 = vmul.f32 1.0, %v1427
          %v1429 = vrcp.pop %v1385
          %v1430 = vmul.f32 1.0, %v1429
          %v1431 = vrcp.pop %v1386
          %v1432 = vmul.f32 1.0, %v1431
          %v1433 = vrcp.pop %v1387
          %v1434 = vmul.f32 1.0, %v1433
          %v1435 = vrcp.pop %v1388
          %v1436 = vmul.f32 1.0, %v1435
          %v1437 = vrcp.pop %v1389
          %v1438 = vmul.f32 1.0, %v1437
          %v1439 = vrcp.pop %v1390
          %v1440 = vmul.f32 1.0, %v1439
          %v1441 = vrcp.pop %v1391
          %v1442 = vmul.f32 1.0, %v1441
          %v1443 = vrcp.pop %v1392
          %v1444 = vmul.f32 1.0, %v1443
          %v1445 = vrcp.pop %v1393
          %v1446 = vmul.f32 1.0, %v1445
          %v1447 = vrcp.pop %v1394
          %v1448 = vmul.f32 1.0, %v1447
          %v1449 = vrcp.pop %v1395
          %v1450 = vmul.f32 1.0, %v1449
          %v1451 = vrcp.pop %v1396
          %v1452 = vmul.f32 1.0, %v1451
          %v1453 = vrcp.pop %v1397
          %v1454 = vmul.f32 1.0, %v1453
          %v1455 = vrcp.pop %v1398
          %v1456 = vmul.f32 1.0, %v1455
          %v1457 = vrcp.pop %v1399
          %v1458 = vmul.f32 1.0, %v1457
          %v1459 = vrcp.pop %v1400
          %v1460 = vmul.f32 1.0, %v1459
          %v1461 = vrcp.pop %v1401
          %v1462 = vmul.f32 1.0, %v1461
          %v1463 = vrcp.pop %v1402
          %v1464 = vmul.f32 1.0, %v1463
          %v1465 = vrcp.pop %v1403
          %v1466 = vmul.f32 1.0, %v1465
          %v1467 = vrcp.pop %v1404
          %v1468 = vmul.f32 1.0, %v1467
          %v1469 = vrcp.pop %v1405
          %v1470 = vmul.f32 1.0, %v1469
          %v1471 = vrcp.pop %v1406
          %v1472 = vmul.f32 1.0, %v1471
          %v1473 = vrcp.pop %v1407
          %v1474 = vmul.f32 1.0, %v1473
          %v1475 = vrcp.pop %v1408
          %v1476 = vmul.f32 1.0, %v1475
          %v1477 = vrcp.pop %v1409
          %v1478 = vmul.f32 1.0, %v1477
          %v1479 = vrcp.pop %v1410
          %v1480 = vmul.f32 1.0, %v1479
          %v1481 = vrcp.pop %v1411
          %v1482 = vmul.f32 1.0, %v1481
          %v1483 = vrcp.pop %v1412
          %v1484 = vmul.f32 1.0, %v1483
          %v1485 = vrcp.pop %v1413
          %v1486 = vmul.f32 1.0, %v1485
          %v1487 = vrcp.pop %v1414
          %v1488 = vmul.f32 1.0, %v1487
          %v1489 = vrcp.pop %v1415
          %v1490 = vmul.f32 1.0, %v1489
          %v1491 = vrcp.pop %v1416
          %v1492 = vmul.f32 1.0, %v1491
          %1493 = vst [vmem:[%s253] sm:$0xff] %v1418
          %1494 = vst [vmem:[%s253 + $0x8] sm:$0xff] %v1420
          %1495 = vst [vmem:[%s253 + $0x10] sm:$0xff] %v1422
          %1496 = vst [vmem:[%s253 + $0x18] sm:$0xff] %v1424
          %1497 = vst [vmem:[%s253 + $0x20] sm:$0xff] %v1426
          %1498 = vst [vmem:[%s253 + $0x28] sm:$0xff] %v1428
          %1499 = vst [vmem:[%s253 + $0x30] sm:$0xff] %v1430
          %1500 = vst [vmem:[%s253 + $0x38] sm:$0xff] %v1432
          %1501 = vst [vmem:[%s253 + $0x40] sm:$0xff] %v1434
          %1502 = vst [vmem:[%s253 + $0x48] sm:$0xff] %v1436
          %1503 = vst [vmem:[%s253 + $0x50] sm:$0xff] %v1438
          %1504 = vst [vmem:[%s253 + $0x58] sm:$0xff] %v1440
          %1505 = vst [vmem:[%s253 + $0x60] sm:$0xff] %v1442
          %1506 = vst [vmem:[%s253 + $0x68] sm:$0xff] %v1444
          %1507 = vst [vmem:[%s253 + $0x70] sm:$0xff] %v1446
          %1508 = vst [vmem:[%s253 + $0x78] sm:$0xff] %v1448
          %1509 = vst [vmem:[%s253 + $0x80] sm:$0xff] %v1450
          %1510 = vst [vmem:[%s253 + $0x88] sm:$0xff] %v1452
          %1511 = vst [vmem:[%s253 + $0x90] sm:$0xff] %v1454
          %1512 = vst [vmem:[%s253 + $0x98] sm:$0xff] %v1456
          %1513 = vst [vmem:[%s253 + $0xa0] sm:$0xff] %v1458
          %1514 = vst [vmem:[%s253 + $0xa8] sm:$0xff] %v1460
          %1515 = vst [vmem:[%s253 + $0xb0] sm:$0xff] %v1462
          %1516 = vst [vmem:[%s253 + $0xb8] sm:$0xff] %v1464
          %1517 = vst [vmem:[%s253 + $0xc0] sm:$0xff] %v1466
          %1518 = vst [vmem:[%s253 + $0xc8] sm:$0xff] %v1468
          %1519 = vst [vmem:[%s253 + $0xd0] sm:$0xff] %v1470
          %1520 = vst [vmem:[%s253 + $0xd8] sm:$0xff] %v1472
          %1521 = vst [vmem:[%s253 + $0xe0] sm:$0xff] %v1474
          %1522 = vst [vmem:[%s253 + $0xe8] sm:$0xff] %v1476
          %1523 = vst [vmem:[%s253 + $0xf0] sm:$0xff] %v1478
          %1524 = vst [vmem:[%s253 + $0xf8] sm:$0xff] %v1480
          %1525 = vst [vmem:[%s253 + $0x100] sm:$0xff] %v1482
          %1526 = vst [vmem:[%s253 + $0x108] sm:$0xff] %v1484
          %1527 = vst [vmem:[%s253 + $0x110] sm:$0xff] %v1486
          %1528 = vst [vmem:[%s253 + $0x118] sm:$0xff] %v1488
          %1529 = vst [vmem:[%s253 + $0x120] sm:$0xff] %v1490
          %1530 = vst [vmem:[%s253 + $0x128] sm:$0xff] %v1492
        $region44: #{tpu_custom_call.1} parent=39 // pred_fallthru
          _
        %s1531 = sld [smem:[#allocation3]]
        %p1532 = scmp.eq.s32.totalorder %s1531, 0
        // Predicated region
        $region45: #{tpu_custom_call.1} parent=39 // pred_check
          %p1533 = pneg %p1532
        $region46: #{tpu_custom_call.1} parent=39 // pred_check_branch
          %1535 = sbr.rel (%p1533) target = $region48
        $region47: #{tpu_custom_call.1} parent=39 // pred_region
          %1536 = vst [vmem:[%s253] sm:$0xff] %v500
          %1537 = vst [vmem:[%s253 + $0x8] sm:$0xff] %v505
          %1538 = vst [vmem:[%s253 + $0x10] sm:$0xff] %v510
          %1539 = vst [vmem:[%s253 + $0x18] sm:$0xff] %v515
          %1540 = vst [vmem:[%s253 + $0x20] sm:$0xff] %v520
          %1541 = vst [vmem:[%s253 + $0x28] sm:$0xff] %v525
          %1542 = vst [vmem:[%s253 + $0x30] sm:$0xff] %v530
          %1543 = vst [vmem:[%s253 + $0x38] sm:$0xff] %v535
          %1544 = vst [vmem:[%s253 + $0x40] sm:$0xff] %v540
          %1545 = vst [vmem:[%s253 + $0x48] sm:$0xff] %v545
          %1546 = vst [vmem:[%s253 + $0x50] sm:$0xff] %v550
          %1547 = vst [vmem:[%s253 + $0x58] sm:$0xff] %v555
          %1548 = vst [vmem:[%s253 + $0x60] sm:$0xff] %v560
          %1549 = vst [vmem:[%s253 + $0x68] sm:$0xff] %v565
          %1550 = vst [vmem:[%s253 + $0x70] sm:$0xff] %v570
          %1551 = vst [vmem:[%s253 + $0x78] sm:$0xff] %v575
          %1552 = vst [vmem:[%s253 + $0x80] sm:$0xff] %v580
          %1553 = vst [vmem:[%s253 + $0x88] sm:$0xff] %v585
          %1554 = vst [vmem:[%s253 + $0x90] sm:$0xff] %v590
          %1555 = vst [vmem:[%s253 + $0x98] sm:$0xff] %v595
          %1556 = vst [vmem:[%s253 + $0xa0] sm:$0xff] %v600
          %1557 = vst [vmem:[%s253 + $0xa8] sm:$0xff] %v605
          %1558 = vst [vmem:[%s253 + $0xb0] sm:$0xff] %v610
          %1559 = vst [vmem:[%s253 + $0xb8] sm:$0xff] %v615
          %1560 = vst [vmem:[%s253 + $0xc0] sm:$0xff] %v620
          %1561 = vst [vmem:[%s253 + $0xc8] sm:$0xff] %v625
          %1562 = vst [vmem:[%s253 + $0xd0] sm:$0xff] %v630
          %1563 = vst [vmem:[%s253 + $0xd8] sm:$0xff] %v635
          %1564 = vst [vmem:[%s253 + $0xe0] sm:$0xff] %v640
          %1565 = vst [vmem:[%s253 + $0xe8] sm:$0xff] %v645
          %1566 = vst [vmem:[%s253 + $0xf0] sm:$0xff] %v650
          %1567 = vst [vmem:[%s253 + $0xf8] sm:$0xff] %v655
          %1568 = vst [vmem:[%s253 + $0x100] sm:$0xff] %v660
          %1569 = vst [vmem:[%s253 + $0x108] sm:$0xff] %v665
          %1570 = vst [vmem:[%s253 + $0x110] sm:$0xff] %v670
          %1571 = vst [vmem:[%s253 + $0x118] sm:$0xff] %v675
          %1572 = vst [vmem:[%s253 + $0x120] sm:$0xff] %v680
          %1573 = vst [vmem:[%s253 + $0x128] sm:$0xff] %v685
        $region48: #{tpu_custom_call.1} parent=39 // pred_fallthru
          _
        %s1574 = sand.u32 %s146, 1
        %s1575 = scalar_lea.sflag [#allocation6], %s1574
        %s1576 = sand.u32 %s146, 1
        %s1577 = smul.addr %s1576, 304
        %s1578 = scalar_lea.vmem [#allocation5], %s1577
        %s1579 = sand.u32 %s172, 1
        %s1580 = scalar_lea.sflag [#allocation8], %s1579
        %s1581 = sand.u32 %s172, 1
        %s1582 = smul.addr %s1581, 152
        %s1583 = scalar_lea.vmem [#allocation7], %s1582
        // Predicated region
        $region49: #{tpu_custom_call.1} parent=39 // pred_check
          %p1584 = pneg %p156
        $region50: #{tpu_custom_call.1} parent=39 // pred_check_branch
          %1586 = sbr.rel (%p1584) target = $region52
        $region51: #{tpu_custom_call.1} parent=39 // pred_region
          %s1587 = smul.u32 38, %s28
          %s1589 = ssub.s32 4864, 4864
          %1590 = vsyncadd %s1575, %s1589
          %s1591 = smul.addr %s1587, 128
          %s1592 = scalar_lea.hbm %s7, %s1591
          %s1593 = sshll.u32 %s1578, 4
          %s1594 = int_to_ptr.vmem [resolvable:$true] %s1593
          %1599 = dma.vmem_to_hbm [thread:$0]  %s1594, 4864, %s1592, %s1575, 128, 128, 8
        $region52: #{tpu_custom_call.1} parent=39 // pred_fallthru
          _
        // Predicated region
        $region53: #{tpu_custom_call.1} parent=39 // pred_check
          %p1600 = pneg %p182
        $region54: #{tpu_custom_call.1} parent=39 // pred_check_branch
          %1602 = sbr.rel (%p1600) target = $region56
        $region55: #{tpu_custom_call.1} parent=39 // pred_region
          %s1603 = smul.u32 38, %s28
          %s1605 = ssub.s32 2432, 2432
          %1606 = vsyncadd %s1580, %s1605
          %s1607 = smul.addr %s1603, 64
          %s1608 = scalar_lea.hbm %s8, %s1607
          %s1609 = sshll.u32 %s1583, 4
          %s1610 = int_to_ptr.vmem [resolvable:$true] %s1609
          %1615 = dma.vmem_to_hbm [thread:$0]  %s1610, 2432, %s1608, %s1580, 64, 64, 4
        $region56: #{tpu_custom_call.1} parent=39 // pred_fallthru
          _
      $region40: #{tpu_custom_call.1} parent=5 // pred_fallthru
        _
      %p1616 = scmp.le.s32.totalorder 2, %s23
      // Predicated region
      $region57: #{tpu_custom_call.1} parent=5 // pred_check
        %p1617 = pneg %p1616
      $region58: #{tpu_custom_call.1} parent=5 // pred_check_branch
        %1619 = sbr.rel (%p1617) target = $region60
      $region59: #{tpu_custom_call.1} parent=5 // pred_region
        %s1620 = ssub.s32 %s23, 2
        // Predicated region
        $region61: #{tpu_custom_call.1} parent=59 // pred_check
          %p1621 = pneg %p162
        $region62: #{tpu_custom_call.1} parent=59 // pred_check_branch
          %1623 = sbr.rel (%p1621) target = $region64
        $region63: #{tpu_custom_call.1} parent=59 // pred_region
          %s1624 = sand.u32 %s147, 1
          %s1625 = scalar_lea.sflag [#allocation6], %s1624
          %s1626 = sand.u32 %s147, 1
          %s1627 = smul.addr %s1626, 304
          %s1628 = scalar_lea.vmem [#allocation5], %s1627
          %1629 = dma.done %s1625, 4864
        $region64: #{tpu_custom_call.1} parent=59 // pred_fallthru
          _
        // Predicated region
        $region65: #{tpu_custom_call.1} parent=59 // pred_check
          %p1630 = pneg %p188
        $region66: #{tpu_custom_call.1} parent=59 // pred_check_branch
          %1632 = sbr.rel (%p1630) target = $region68
        $region67: #{tpu_custom_call.1} parent=59 // pred_region
          %s1633 = sand.u32 %s173, 1
          %s1634 = scalar_lea.sflag [#allocation8], %s1633
          %s1635 = sand.u32 %s173, 1
          %s1636 = smul.addr %s1635, 152
          %s1637 = scalar_lea.vmem [#allocation7], %s1636
          %1638 = dma.done %s1634, 2432
        $region68: #{tpu_custom_call.1} parent=59 // pred_fallthru
          _
      $region60: #{tpu_custom_call.1} parent=5 // pred_fallthru
        _
    $region6: #{tpu_custom_call.1} parent=1 // loop_footer
      %s27 = sadd.s32 1, %s23
    $region7: #{tpu_custom_call.1} parent=1 // loop_footer_branch
      %22 = sbr.rel target = $region3
    $region8: #{tpu_custom_call.1} parent=1 // loop_exit
      _
    %1639 = vsyncpa [#allocation6], 1
    %s1640 = scalar_lea.sflag [#allocation6], 1
    %1641 = vsyncpa %s1640, 1
    %1642 = vsyncpa [#allocation8], 1
    %s1643 = scalar_lea.sflag [#allocation8], 1
    %1644 = vsyncpa %s1643, 1

</llo_original>
